<compile_context>
chip_gen: v6e
topology: v6e:2x2x1
jax: 0.10.0
libtpu: 0.0.40
codegen_flags: <defaults>
</compile_context>

<pallas_src>
import functools

import jax
import jax.numpy as jnp
import numpy as np
from jax.experimental import pallas as pl
from jax.experimental.pallas import tpu as pltpu

MID = 300  # A_mid_channel / B_mid_channel from the module __init__


def _round_up(x, m):
    return ((x + m - 1) // m) * m


# --------------------------------------------------------------------------------------
# Feature nets (SineLayer + Linear) for BOTH axes in one tiny kernel. Run once, f32.
# --------------------------------------------------------------------------------------
def _feature_nets_kernel(omega,
                         a_in_ref, wa1t_ref, ba1_ref, wa2t_ref, ba2_ref,
                         b_in_ref, wb1t_ref, bb1_ref, wb2t_ref, bb2_ref,
                         a_hat_ref, b_hat_ref):
    # Linear with fan_in=1 is a broadcasted multiply: (n, 1) * (1, MID) + (1, MID).
    a_feat = jnp.sin(omega * (a_in_ref[...] * wa1t_ref[...] + ba1_ref[...]))    # (n1, MID)
    a_hat_ref[...] = (jnp.dot(a_feat, wa2t_ref[...],
                              preferred_element_type=jnp.float32) + ba2_ref[...])
    b_feat = jnp.sin(omega * (b_in_ref[...] * wb1t_ref[...] + bb1_ref[...]))    # (n2, MID)
    b_hat_ref[...] = (jnp.dot(b_feat, wb2t_ref[...],
                              preferred_element_type=jnp.float32) + bb2_ref[...])


def _feature_nets(params, a_input, b_input, omega):
    n1 = a_input.shape[0]
    n2 = b_input.shape[0]
    r = params["wa2t"].shape[1]
    return pl.pallas_call(
        functools.partial(_feature_nets_kernel, float(omega)),
        out_shape=(jax.ShapeDtypeStruct((n1, r), jnp.float32),
                   jax.ShapeDtypeStruct((n2, r), jnp.float32)),
    )(a_input, params["wa1t"], params["ba1"], params["wa2t"], params["ba2"],
      b_input, params["wb1t"], params["bb1"], params["wb2t"], params["bb2"])


# --------------------------------------------------------------------------------------
# Hot path: two lane-dense MXU matmuls per tile of tm A-rows. No reshapes, no expansion.
#   y = A_tile @ W1_fat          (tm, n2*r)   -- B_hat already folded into W1_fat
#   y = leaky_relu(y, 0.01)
#   z = y @ W2_bd                (tm, n2*n3)  -- block-diagonal W2, lane-dense output
# --------------------------------------------------------------------------------------
def _drotff_head_kernel(a_ref, w1fat_ref, w2bd_ref, o_ref):
    a = a_ref[...]                                                        # (tm, r) bf16
    y = jnp.dot(a, w1fat_ref[...], preferred_element_type=jnp.float32)    # (tm, K2p) f32
    y = jnp.where(y >= 0, y, 0.01 * y)                                    # LeakyReLU(0.01)
    z = jnp.dot(y.astype(w2bd_ref.dtype), w2bd_ref[...],
                preferred_element_type=jnp.float32)                       # (tm, Np) f32
    o_ref[...] = z.astype(o_ref.dtype)


def _vmem_limits():
    """Per-generation VMEM limit + tile-sizing budget (v7x=64MiB, v5e/v6e=128MiB)."""
    cap = 64 << 20  # conservative default (v7x per-TC VMEM)
    try:
        info = pltpu.get_tpu_info()
        cap = int(getattr(info, "vmem_capacity_bytes", cap)) or cap
    except Exception:
        pass
    limit = max(32 << 20, min((cap * 3) // 4, 96 << 20))   # 48 MiB v7x, 96 MiB v5e/v6e
    budget = limit // 2                                     # headroom for compiler scratch
    return limit, budget


def _pick_tm(m_pad, r, k2_pad, n_pad, budget_bytes):
    """Largest A-row tile whose resident VMEM state fits the budget."""
    per_row = (
        2 * r * 2            # (tm, r) bf16 A tile, x2 pipeline buffers
        + 2 * n_pad * 4      # (tm, n_pad) f32 output tile, x2 pipeline buffers
        + k2_pad * 4         # y  (tm, k2_pad) f32
        + k2_pad * 2         # y  bf16 copy fed to the second MXU matmul
        + n_pad * 4          # z  (tm, n_pad) f32
    )
    fixed = 2 * (r * k2_pad + k2_pad * n_pad) * 2           # W1_fat + W2_bd, x2 buffers
    avail = max(budget_bytes - fixed, 8 * per_row)
    tm = int(avail // per_row)
    tm = max(8, (tm // 8) * 8)
    tm = min(tm, m_pad)
    if m_pad >= 16:          # guarantee >= 2 grid steps so both v7x TensorCores get work
        tm = min(tm, max(8, (m_pad // 2 // 8) * 8))
    while m_pad % tm != 0:   # tile must evenly divide the padded M dimension
        tm -= 8
    return max(tm, 8)


def drotff_forward(params, a_input, b_input, *, omega, tm=None,
                   compute_dtype=jnp.bfloat16):
    n1 = a_input.shape[0]
    n2 = b_input.shape[0]
    r = params["w1t"].shape[0]
    n3 = params["w2t"].shape[1]

    # ---- feature nets: one launch, f32 throughout -------------------------------------
    a_hat, b_hat = _feature_nets(params, a_input, b_input, omega)        # (n1,r), (n2,r) f32

    # ---- one-time weight packing (plain jnp; XLA folds/fuses it) ----------------------
    # W1_fat[k, j*r + s] = B_hat[j, k] * W1^T[k, s]      -> (r, n2*r)
    w1_fat = (b_hat.T[:, :, None] * params["w1t"][:, None, :]).reshape(r, n2 * r)
    # W2_bd  = kron(I_n2, W2^T)                          -> (n2*r, n2*n3)
    w2_bd = jnp.kron(jnp.eye(n2, dtype=jnp.float32), params["w2t"])

    # Pad lane dims to multiples of 128 (lane-dense MXU / unmasked stores); the padded
    # columns of W1_fat and rows of W2_bd are zero, so results are unchanged.
    k2, n_out = n2 * r, n2 * n3
    k2_pad, n_pad = _round_up(k2, 128), _round_up(n_out, 128)
    if k2_pad != k2:
        w1_fat = jnp.pad(w1_fat, ((0, 0), (0, k2_pad - k2)))
        w2_bd = jnp.pad(w2_bd, ((0, k2_pad - k2), (0, 0)))
    if n_pad != n_out:
        w2_bd = jnp.pad(w2_bd, ((0, 0), (0, n_pad - n_out)))

    m_pad = _round_up(n1, 8)
    a_hat_p = a_hat if m_pad == n1 else jnp.pad(a_hat, ((0, m_pad - n1), (0, 0)))

    # Single bf16 cast per operand (accumulation stays f32 inside the kernel).
    a_hat_c = a_hat_p.astype(compute_dtype)
    w1_fat_c = w1_fat.astype(compute_dtype)
    w2_bd_c = w2_bd.astype(compute_dtype)

    vmem_limit, budget = _vmem_limits()
    if tm is None:
        tm = _pick_tm(m_pad, r, k2_pad, n_pad, budget)
    assert m_pad % tm == 0, (m_pad, tm)

    out_flat = pl.pallas_call(
        _drotff_head_kernel,
        out_shape=jax.ShapeDtypeStruct((m_pad, n_pad), jnp.float32),
        grid=(m_pad // tm,),
        in_specs=[
            pl.BlockSpec((tm, r), lambda i: (i, 0)),          # A_hat tile
            pl.BlockSpec((r, k2_pad), lambda i: (0, 0)),      # W1_fat (B folded in)
            pl.BlockSpec((k2_pad, n_pad), lambda i: (0, 0)),  # block-diag W2
        ],
        out_specs=pl.BlockSpec((tm, n_pad), lambda i: (i, 0)),
        compiler_params=pltpu.CompilerParams(
            dimension_semantics=("parallel",),
            vmem_limit_bytes=int(vmem_limit),
        ),
    )(a_hat_c, w1_fat_c, w2_bd_c)

    return out_flat[:n1, :n_out].reshape(n1, n2, n3)


# --------------------------------------------------------------------------------------
# Params / reference
# --------------------------------------------------------------------------------------
def init_params(key, n3, r):
    """Deterministic init mimicking torch.nn.Linear default U(-1/sqrt(fan_in), ...)."""
    def linear(key, fan_in, fan_out, bias=True):
        k_w, k_b = jax.random.split(key)
        bound = 1.0 / np.sqrt(fan_in)
        w = jax.random.uniform(k_w, (fan_out, fan_in), jnp.float32, -bound, bound)
        b = (jax.random.uniform(k_b, (fan_out,), jnp.float32, -bound, bound)
             if bias else None)
        return w, b

    keys = jax.random.split(key, 6)
    wa1, ba1 = linear(keys[0], 1, MID)
    wa2, ba2 = linear(keys[1], MID, r)
    wb1, bb1 = linear(keys[2], 1, MID)
    wb2, bb2 = linear(keys[3], MID, r)
    w1, _ = linear(keys[4], r, r, bias=False)
    w2, _ = linear(keys[5], r, n3, bias=False)

    # Pre-transpose weights / reshape biases so kernels do pure row-major matmuls.
    return dict(
        wa1t=wa1.T, ba1=ba1.reshape(1, MID), wa2t=wa2.T, ba2=ba2.reshape(1, r),
        wb1t=wb1.T, bb1=bb1.reshape(1, MID), wb2t=wb2.T, bb2=bb2.reshape(1, r),
        w1t=w1.T, w2t=w2.T,
    )


def reference_forward(params, a_input, b_input, omega):
    """Pure-JAX f32 reference matching the PyTorch module exactly."""
    a_hat = jnp.dot(jnp.sin(omega * (a_input * params["wa1t"] + params["ba1"])),
                    params["wa2t"]) + params["ba2"]                  # (n1, r)
    b_hat = jnp.dot(jnp.sin(omega * (b_input * params["wb1t"] + params["bb1"])),
                    params["wb2t"]) + params["bb2"]                  # (n2, r)
    x = a_hat[:, None, :] * b_hat[None, :, :]                        # (n1, n2, r)
    y = jnp.einsum("ijr,rs->ijs", x, params["w1t"])
    y = jnp.where(y >= 0, y, 0.01 * y)
    return jnp.einsum("ijr,rs->ijs", y, params["w2t"])               # (n1, n2, n3)


if __name__ == "__main__":
    # Small, forward-consistent sizes: n_1 = n_2 = 16 "pixels", n_3 = 8 frames, rank r = 32.
    n1, n2, n3, r, omega = 16, 16, 8, 32, 30.0

    key = jax.random.PRNGKey(0)
    params = init_params(key, n3=n3, r=r)

    # The module's own inputs: coordinate columns 1..n (float32), shape (n, 1).
    a_input = jnp.arange(1, n1 + 1, dtype=jnp.float32).reshape(n1, 1)
    b_input = jnp.arange(1, n2 + 1, dtype=jnp.float32).reshape(n2, 1)

    out = drotff_forward(params, a_input, b_input, omega=omega)
    out = jax.block_until_ready(out)

    ref = jax.block_until_ready(reference_forward(params, a_input, b_input, omega))

    assert out.shape == (n1, n2, n3), out.shape
    np.testing.assert_allclose(np.asarray(out), np.asarray(ref), rtol=1e-3, atol=1e-2)
    print("KERNEL_OK")
</pallas_src>

<mosaic_0001>
module attributes {stable_mosaic.version = 11 : i64} {
  func.func @_feature_nets_kernel(%arg0: memref<16x1xf32, #tpu.memory_space<vmem>>, %arg1: memref<1x300xf32, #tpu.memory_space<vmem>>, %arg2: memref<1x300xf32, #tpu.memory_space<vmem>>, %arg3: memref<300x32xf32, #tpu.memory_space<vmem>>, %arg4: memref<1x32xf32, #tpu.memory_space<vmem>>, %arg5: memref<16x1xf32, #tpu.memory_space<vmem>>, %arg6: memref<1x300xf32, #tpu.memory_space<vmem>>, %arg7: memref<1x300xf32, #tpu.memory_space<vmem>>, %arg8: memref<300x32xf32, #tpu.memory_space<vmem>>, %arg9: memref<1x32xf32, #tpu.memory_space<vmem>>, %arg10: memref<16x32xf32, #tpu.memory_space<vmem>>, %arg11: memref<16x32xf32, #tpu.memory_space<vmem>>) attributes {dimension_semantics = [], scalar_prefetch = 0 : i64, scratch_operands = 0 : i64, tpu.core_type = #tpu.core_type<tc>} {
    %c0 = arith.constant 0 : index
    %c0_0 = arith.constant 0 : index
    %0 = vector.load %arg0[%c0, %c0_0] : memref<16x1xf32, #tpu.memory_space<vmem>>, vector<16x1xf32>
    %c0_1 = arith.constant 0 : index
    %c0_2 = arith.constant 0 : index
    %1 = vector.load %arg1[%c0_1, %c0_2] : memref<1x300xf32, #tpu.memory_space<vmem>>, vector<1x300xf32>
    %2 = vector.broadcast %0 : vector<16x1xf32> to vector<16x300xf32>
    %3 = vector.broadcast %1 : vector<1x300xf32> to vector<16x300xf32>
    %4 = arith.mulf %2, %3 : vector<16x300xf32>
    %c0_3 = arith.constant 0 : index
    %c0_4 = arith.constant 0 : index
    %5 = vector.load %arg2[%c0_3, %c0_4] : memref<1x300xf32, #tpu.memory_space<vmem>>, vector<1x300xf32>
    %6 = vector.broadcast %5 : vector<1x300xf32> to vector<16x300xf32>
    %7 = arith.addf %4, %6 : vector<16x300xf32>
    %cst = arith.constant 3.000000e+01 : f32
    %8 = vector.broadcast %cst : f32 to vector<16x300xf32>
    %9 = arith.mulf %8, %7 : vector<16x300xf32>
    %10 = math.sin %9 : vector<16x300xf32>
    %c0_5 = arith.constant 0 : index
    %c0_6 = arith.constant 0 : index
    %11 = vector.load %arg3[%c0_5, %c0_6] : memref<300x32xf32, #tpu.memory_space<vmem>>, vector<300x32xf32>
    %cst_7 = arith.constant dense<0.000000e+00> : vector<16x32xf32>
    %12 = tpu.matmul %10, %11, %cst_7 {dimension_numbers = #tpu.dot_dimension_numbers<[1], [0], [0], [1], [0, 0, 1, 1], [], []>} : vector<16x300xf32>, vector<300x32xf32>, vector<16x32xf32> -> vector<16x32xf32>
    %c0_8 = arith.constant 0 : index
    %c0_9 = arith.constant 0 : index
    %13 = vector.load %arg4[%c0_8, %c0_9] : memref<1x32xf32, #tpu.memory_space<vmem>>, vector<1x32xf32>
    %14 = vector.broadcast %13 : vector<1x32xf32> to vector<16x32xf32>
    %15 = arith.addf %12, %14 : vector<16x32xf32>
    %c0_10 = arith.constant 0 : index
    %c0_11 = arith.constant 0 : index
    %16 = vector.load %arg10[%c0_10, %c0_11] : memref<16x32xf32, #tpu.memory_space<vmem>>, vector<16x32xf32>
    tpu.vector_store %arg10[%c0_10, %c0_11], %15 {strides = array<i32>} : memref<16x32xf32, #tpu.memory_space<vmem>>, vector<16x32xf32>,
    %c0_12 = arith.constant 0 : index
    %c0_13 = arith.constant 0 : index
    %17 = vector.load %arg5[%c0_12, %c0_13] : memref<16x1xf32, #tpu.memory_space<vmem>>, vector<16x1xf32>
    %c0_14 = arith.constant 0 : index
    %c0_15 = arith.constant 0 : index
    %18 = vector.load %arg6[%c0_14, %c0_15] : memref<1x300xf32, #tpu.memory_space<vmem>>, vector<1x300xf32>
    %19 = vector.broadcast %17 : vector<16x1xf32> to vector<16x300xf32>
    %20 = vector.broadcast %18 : vector<1x300xf32> to vector<16x300xf32>
    %21 = arith.mulf %19, %20 : vector<16x300xf32>
    %c0_16 = arith.constant 0 : index
    %c0_17 = arith.constant 0 : index
    %22 = vector.load %arg7[%c0_16, %c0_17] : memref<1x300xf32, #tpu.memory_space<vmem>>, vector<1x300xf32>
    %23 = vector.broadcast %22 : vector<1x300xf32> to vector<16x300xf32>
    %24 = arith.addf %21, %23 : vector<16x300xf32>
    %cst_18 = arith.constant 3.000000e+01 : f32
    %25 = vector.broadcast %cst_18 : f32 to vector<16x300xf32>
    %26 = arith.mulf %25, %24 : vector<16x300xf32>
    %27 = math.sin %26 : vector<16x300xf32>
    %c0_19 = arith.constant 0 : index
    %c0_20 = arith.constant 0 : index
    %28 = vector.load %arg8[%c0_19, %c0_20] : memref<300x32xf32, #tpu.memory_space<vmem>>, vector<300x32xf32>
    %cst_21 = arith.constant dense<0.000000e+00> : vector<16x32xf32>
    %29 = tpu.matmul %27, %28, %cst_21 {dimension_numbers = #tpu.dot_dimension_numbers<[1], [0], [0], [1], [0, 0, 1, 1], [], []>} : vector<16x300xf32>, vector<300x32xf32>, vector<16x32xf32> -> vector<16x32xf32>
    %c0_22 = arith.constant 0 : index
    %c0_23 = arith.constant 0 : index
    %30 = vector.load %arg9[%c0_22, %c0_23] : memref<1x32xf32, #tpu.memory_space<vmem>>, vector<1x32xf32>
    %31 = vector.broadcast %30 : vector<1x32xf32> to vector<16x32xf32>
    %32 = arith.addf %29, %31 : vector<16x32xf32>
    %c0_24 = arith.constant 0 : index
    %c0_25 = arith.constant 0 : index
    %33 = vector.load %arg11[%c0_24, %c0_25] : memref<16x32xf32, #tpu.memory_space<vmem>>, vector<16x32xf32>
    tpu.vector_store %arg11[%c0_24, %c0_25], %32 {strides = array<i32>} : memref<16x32xf32, #tpu.memory_space<vmem>>, vector<16x32xf32>,
    return
  }
}

</mosaic_0001>

<llo_original>
// kernel: tpu_custom_call.1
$region0: #{tpu_custom_call.1}
  #allocation0 [shape = 'u32[]', space=smem, size = 0x4, offset = 0x4, fixed_abs, tag = 'smem constant byte address 0x4 - core index']
  #allocation1 [shape = 'u32[144,128]{1,0:T(1,128)}', space=vmem, size = 0x12000, scoped, tag = 'internal scratch']
  %s0 = inlined_call_operand.vmem [shape: f32[16,1], index: 0, kind: input, shape index: {}]
  %s1 = inlined_call_operand.vmem [shape: f32[1,300], index: 1, kind: input, shape index: {}]
  %s2 = inlined_call_operand.vmem [shape: f32[1,300], index: 2, kind: input, shape index: {}]
  %s3 = inlined_call_operand.vmem [shape: f32[300,32], index: 3, kind: input, shape index: {}]
  %s4 = inlined_call_operand.vmem [shape: f32[1,32], index: 4, kind: input, shape index: {}]
  %s5 = inlined_call_operand.vmem [shape: f32[16,1], index: 5, kind: input, shape index: {}]
  %s6 = inlined_call_operand.vmem [shape: f32[1,300], index: 6, kind: input, shape index: {}]
  %s7 = inlined_call_operand.vmem [shape: f32[1,300], index: 7, kind: input, shape index: {}]
  %s8 = inlined_call_operand.vmem [shape: f32[300,32], index: 8, kind: input, shape index: {}]
  %s9 = inlined_call_operand.vmem [shape: f32[1,32], index: 9, kind: input, shape index: {}]
  %s10 = inlined_call_operand.hbm [shape: f32[16,32], index: 10, kind: output, shape index: {0}]
  %s11 = inlined_call_operand.hbm [shape: f32[16,32], index: 11, kind: output, shape index: {1}]
  %12 = xla_tuple %s10, %s11
  %s13 = sld [smem:[#allocation0]]
  $region58: #{tpu_custom_call.1} parent=0
    _
  %s15 = ssub.s32 1, %s13
  %s16 = scalar_select 0, %s15, %s13
  $region1: #{tpu_custom_call.1} parent=0
    #allocation2 [shape = 'u8[8192]{0}', space=vmem, size = 0x2000, scoped, tag = 'output window, operand 0, single buffered']
    #allocation3 [shape = 's32[1]{0}', space=sflag, size = 0x4, scoped, tag = 'scoped memory for tpu_custom_call.1']
    #allocation4 [shape = 'u8[8192]{0}', space=vmem, size = 0x2000, scoped, tag = 'output window, operand 1, single buffered']
    #allocation5 [shape = 's32[1]{0}', space=sflag, size = 0x4, scoped, tag = 'scoped memory for tpu_custom_call.1']
    %17 = vsyncpa [#allocation3], 0
    %18 = vsyncpa [#allocation5], 0
    // Predicated region
    $region2: #{tpu_custom_call.1} parent=1 // pred_check
      _
    $region3: #{tpu_custom_call.1} parent=1 // pred_check_branch
      %20 = sbr.rel (0) target = $region5
    $region4: #{tpu_custom_call.1} parent=1 // pred_region
      _
    $region5: #{tpu_custom_call.1} parent=1 // pred_fallthru
      _
    // Predicated region
    $region6: #{tpu_custom_call.1} parent=1 // pred_check
      _
    $region7: #{tpu_custom_call.1} parent=1 // pred_check_branch
      %22 = sbr.rel (0) target = $region9
    $region8: #{tpu_custom_call.1} parent=1 // pred_region
      _
    $region9: #{tpu_custom_call.1} parent=1 // pred_fallthru
      _
    // Predicated region
    $region10: #{tpu_custom_call.1} parent=1 // pred_check
      _
    $region11: #{tpu_custom_call.1} parent=1 // pred_check_branch
      %24 = sbr.rel (0) target = $region13
    $region12: #{tpu_custom_call.1} parent=1 // pred_region
      _
    $region13: #{tpu_custom_call.1} parent=1 // pred_fallthru
      _
    // Predicated region
    $region14: #{tpu_custom_call.1} parent=1 // pred_check
      _
    $region15: #{tpu_custom_call.1} parent=1 // pred_check_branch
      %26 = sbr.rel (0) target = $region17
    $region16: #{tpu_custom_call.1} parent=1 // pred_region
      _
    $region17: #{tpu_custom_call.1} parent=1 // pred_fallthru
      _
    // Predicated region
    $region18: #{tpu_custom_call.1} parent=1 // pred_check
      _
    $region19: #{tpu_custom_call.1} parent=1 // pred_check_branch
      %28 = sbr.rel (0) target = $region21
    $region20: #{tpu_custom_call.1} parent=1 // pred_region
      _
    $region21: #{tpu_custom_call.1} parent=1 // pred_fallthru
      _
    // Predicated region
    $region22: #{tpu_custom_call.1} parent=1 // pred_check
      _
    $region23: #{tpu_custom_call.1} parent=1 // pred_check_branch
      %30 = sbr.rel (0) target = $region25
    $region24: #{tpu_custom_call.1} parent=1 // pred_region
      _
    $region25: #{tpu_custom_call.1} parent=1 // pred_fallthru
      _
    // Predicated region
    $region26: #{tpu_custom_call.1} parent=1 // pred_check
      _
    $region27: #{tpu_custom_call.1} parent=1 // pred_check_branch
      %32 = sbr.rel (0) target = $region29
    $region28: #{tpu_custom_call.1} parent=1 // pred_region
      _
    $region29: #{tpu_custom_call.1} parent=1 // pred_fallthru
      _
    // Predicated region
    $region30: #{tpu_custom_call.1} parent=1 // pred_check
      _
    $region31: #{tpu_custom_call.1} parent=1 // pred_check_branch
      %34 = sbr.rel (0) target = $region33
    $region32: #{tpu_custom_call.1} parent=1 // pred_region
      _
    $region33: #{tpu_custom_call.1} parent=1 // pred_fallthru
      _
    // Predicated region
    $region34: #{tpu_custom_call.1} parent=1 // pred_check
      _
    $region35: #{tpu_custom_call.1} parent=1 // pred_check_branch
      %36 = sbr.rel (0) target = $region37
    $region36: #{tpu_custom_call.1} parent=1 // pred_region
      _
    $region37: #{tpu_custom_call.1} parent=1 // pred_fallthru
      _
    // Predicated region
    $region38: #{tpu_custom_call.1} parent=1 // pred_check
      _
    $region39: #{tpu_custom_call.1} parent=1 // pred_check_branch
      %38 = sbr.rel (0) target = $region41
    $region40: #{tpu_custom_call.1} parent=1 // pred_region
      _
    $region41: #{tpu_custom_call.1} parent=1 // pred_fallthru
      _
    %v39 = vld [vmem:[%s0] sm:$0xff]
    %v40 = vld [vmem:[%s0 + $0x8] sm:$0xff]
    %v41 = vld [vmem:[%s1] sm:$0x7]
    %43 = vset.pattern.permute.xlu0 0
    %44 = vperm.xlu0 %43, %v39
    %v45 = vpop.permute.xlu0 %44
    %48 = vset.pattern.permute.xlu0 0
    %49 = vperm.xlu0 %48, %v40
    %v50 = vpop.permute.xlu0 %49
    %v53 = vlaneseq
    %v54 = vshrl.u32 %v53, 7
    %v55 = vsub.s32 0, %v54
    %v56 = vrot.slane %v41, %v55
    %v57 = vlaneseq
    %v58 = vshrl.u32 %v57, 7
    %v59 = vsub.s32 1, %v58
    %v60 = vrot.slane %v41, %v59
    %v61 = vlaneseq
    %v62 = vshrl.u32 %v61, 7
    %v63 = vsub.s32 2, %v62
    %v64 = vrot.slane %v41, %v63
    %v68 = vmul.f32 %v45, %v56
    %v69 = vmul.f32 %v45, %v60
    %v70 = vmul.f32 %v45, %v64
    %v71 = vmul.f32 %v50, %v56
    %v72 = vmul.f32 %v50, %v60
    %v73 = vmul.f32 %v50, %v64
    %v74 = vld [vmem:[%s2] sm:$0x7]
    %v76 = vlaneseq
    %v77 = vshrl.u32 %v76, 7
    %v78 = vsub.s32 0, %v77
    %v79 = vrot.slane %v74, %v78
    %v80 = vlaneseq
    %v81 = vshrl.u32 %v80, 7
    %v82 = vsub.s32 1, %v81
    %v83 = vrot.slane %v74, %v82
    %v84 = vlaneseq
    %v85 = vshrl.u32 %v84, 7
    %v86 = vsub.s32 2, %v85
    %v87 = vrot.slane %v74, %v86
    %v91 = vadd.f32 %v68, %v79
    %v92 = vadd.f32 %v69, %v83
    %v93 = vadd.f32 %v70, %v87
    %v94 = vadd.f32 %v71, %v79
    %v95 = vadd.f32 %v72, %v83
    %v96 = vadd.f32 %v73, %v87
    %v97 = vmul.f32 %v91, 30.0
    %v98 = vmul.f32 %v92, 30.0
    %v99 = vmul.f32 %v93, 30.0
    %v100 = vmul.f32 %v94, 30.0
    %v101 = vmul.f32 %v95, 30.0
    %v102 = vmul.f32 %v96, 30.0
    %v103 = vand.u32 2147483647, %v97
    %vm104 = vcmp.le.f32.partialorder %v103, 0.7853982
    %vm105 = vcmp.lt.s32.totalorder %v97, 0
    %v106 = vand.u32 %v97, 2139095040
    %v107 = vshrl.u32 %v106, 23
    %v108 = vsub.s32 %v107, 127
    %v109 = vand.u32 2147483647, %v97
    %v110 = vand.u32 %v109, 8388607
    %v111 = vor.u32 %v110, 8388608
    %v112 = vsub.s32 0, %v111
    %v113 = vadd.s32 %v108, 1
    %vm114 = vcmp.gt.s32.totalorder %v113, 0
    %v115 = vsel %vm114, %v113, 0
    %v116 = vshrl.u32 %v115, 5
    %v117 = vand.u32 %v115, 31
    %v118 = vsub.s32 32, %v117
    %v119 = vshrl.u32 683565275, %v118
    %v120 = vshll.u32 683565275, %v117
    %v121 = vshrl.u32 2475754826, %v118
    %v122 = vor.u32 %v120, %v121
    %v123 = vshll.u32 2475754826, %v117
    %v124 = vshrl.u32 2131351028, %v118
    %v125 = vor.u32 %v123, %v124
    %v126 = vshll.u32 2131351028, %v117
    %v127 = vshrl.u32 2102212464, %v118
    %v128 = vor.u32 %v126, %v127
    %v129 = vshll.u32 2102212464, %v117
    %v130 = vshrl.u32 920167782, %v118
    %v131 = vor.u32 %v129, %v130
    %v132 = vshll.u32 920167782, %v117
    %v133 = vshrl.u32 1326507024, %v118
    %v134 = vor.u32 %v132, %v133
    %vm135 = vcmp.lt.s32.totalorder %v116, 1
    %vm136 = vcmp.lt.s32.totalorder %v116, 2
    %vm137 = vcmp.lt.s32.totalorder %v116, 3
    %vm138 = vcmp.lt.s32.totalorder %v116, 4
    %v139 = vsel %vm135, %v119, %v122
    %v140 = vsel %vm138, %v128, 2102212464
    %v141 = vsel %vm137, %v125, %v140
    %v142 = vsel %vm136, %v139, %v141
    %v143 = vsel %vm135, %v122, %v125
    %v144 = vsel %vm138, %v131, 920167782
    %v145 = vsel %vm137, %v128, %v144
    %v146 = vsel %vm136, %v143, %v145
    %v147 = vsel %vm135, %v125, %v128
    %v148 = vsel %vm138, %v134, 1326507024
    %v149 = vsel %vm137, %v131, %v148
    %v150 = vsel %vm136, %v147, %v149
    %v151 = vshll.u32 %v111, 8
    %v152 = vmul.u32.u64.compose %v151, %v150
    %v153 = vextract.low.u32 %v152
    %v154 = vextract.high.u32 %v152
    %v155 = vmul.u32.u64.compose %v151, %v146
    %v156 = vextract.low.u32 %v155
    %v157 = vextract.high.u32 %v155
    %v158 = vmul.u32 %v151, %v142
    %v159 = vadd.s32 %v154, %v156
    %vm160 = vc.u32 %v154, %v156
    %v161 = vadd.s32 %v157, 1
    %v162 = vsel %vm160, %v161, %v157
    %v163 = vadd.s32 %v158, %v162
    %v164 = vadd.s32 %v163, 536870912
    %v165 = vshrl.u32 %v164, 30
    %v166 = vshll.u32 %v165, 30
    %v167 = vsub.s32 %v163, %v166
    %vm168 = vcmp.lt.s32.totalorder %v167, 0
    %v169 = vsub.s32 0, %v167
    %v170 = vsel %vm168, %v169, %v167
    %v171 = vclz %v170
    %v172 = vsub.s32 %v171, 2
    %vm173 = vcmp.gt.s32.totalorder 0, %v172
    %v174 = vsel %vm173, 0, %v172
    %v175 = vsub.s32 32, %v174
    %v176 = vshll.u32 %v167, %v174
    %v177 = vshrl.u32 %v159, %v175
    %v178 = vor.u32 %v176, %v177
    %v179 = vsub.s32 4294967266, %v174
    %v180 = vadd.s32 %v179, 127
    %v181 = vshll.u32 %v180, 23
    %v182 = vor.u32 4788187, %v181
    %v183 = vand.u32 2147483647, %v182
    %v185 = vcvt.s32.f32 %v178
    %v186 = vmul.f32 %v185, %v183
    %v187 = vxor.u32 %v186, 2147483648
    %v188 = vsel %vm105, %v187, %v186
    %v189 = vsub.s32 4, %v165
    %v190 = vsel %vm105, %v189, %v165
    %v191 = vsel %vm104, %v97, %v188
    %v192 = vsel %vm104, 0, %v190
    %v193 = vcosq.f32.pop %v191
    %v194 = vsinq.f32.pop %v191
    %vm195 = vweird.f32 %v97
    %v196 = vadd.s32 %v192, 3
    %v197 = vand.u32 %v196, 3
    %vm198 = vcmp.lt.s32.totalorder %v197, 2
    %vm199 = vcmp.eq.s32.totalorder %v197, 0
    %v200 = vxor.u32 %v194, 2147483648
    %v201 = vsel %vm199, %v193, %v200
    %vm202 = vcmp.eq.s32.totalorder %v197, 2
    %v203 = vxor.u32 %v193, 2147483648
    %v204 = vsel %vm202, %v203, %v194
    %v205 = vsel %vm198, %v201, %v204
    %v206 = vsel %vm195, nan, %v205
    %v207 = vand.u32 2147483647, %v98
    %vm208 = vcmp.le.f32.partialorder %v207, 0.7853982
    %vm209 = vcmp.lt.s32.totalorder %v98, 0
    %v210 = vand.u32 %v98, 2139095040
    %v211 = vshrl.u32 %v210, 23
    %v212 = vsub.s32 %v211, 127
    %v213 = vand.u32 2147483647, %v98
    %v214 = vand.u32 %v213, 8388607
    %v215 = vor.u32 %v214, 8388608
    %v216 = vsub.s32 0, %v215
    %v217 = vadd.s32 %v212, 1
    %vm218 = vcmp.gt.s32.totalorder %v217, 0
    %v219 = vsel %vm218, %v217, 0
    %v220 = vshrl.u32 %v219, 5
    %v221 = vand.u32 %v219, 31
    %v222 = vsub.s32 32, %v221
    %v223 = vshrl.u32 683565275, %v222
    %v224 = vshll.u32 683565275, %v221
    %v225 = vshrl.u32 2475754826, %v222
    %v226 = vor.u32 %v224, %v225
    %v227 = vshll.u32 2475754826, %v221
    %v228 = vshrl.u32 2131351028, %v222
    %v229 = vor.u32 %v227, %v228
    %v230 = vshll.u32 2131351028, %v221
    %v231 = vshrl.u32 2102212464, %v222
    %v232 = vor.u32 %v230, %v231
    %v233 = vshll.u32 2102212464, %v221
    %v234 = vshrl.u32 920167782, %v222
    %v235 = vor.u32 %v233, %v234
    %v236 = vshll.u32 920167782, %v221
    %v237 = vshrl.u32 1326507024, %v222
    %v238 = vor.u32 %v236, %v237
    %vm239 = vcmp.lt.s32.totalorder %v220, 1
    %vm240 = vcmp.lt.s32.totalorder %v220, 2
    %vm241 = vcmp.lt.s32.totalorder %v220, 3
    %vm242 = vcmp.lt.s32.totalorder %v220, 4
    %v243 = vsel %vm239, %v223, %v226
    %v244 = vsel %vm242, %v232, 2102212464
    %v245 = vsel %vm241, %v229, %v244
    %v246 = vsel %vm240, %v243, %v245
    %v247 = vsel %vm239, %v226, %v229
    %v248 = vsel %vm242, %v235, 920167782
    %v249 = vsel %vm241, %v232, %v248
    %v250 = vsel %vm240, %v247, %v249
    %v251 = vsel %vm239, %v229, %v232
    %v252 = vsel %vm242, %v238, 1326507024
    %v253 = vsel %vm241, %v235, %v252
    %v254 = vsel %vm240, %v251, %v253
    %v255 = vshll.u32 %v215, 8
    %v256 = vmul.u32.u64.compose %v255, %v254
    %v257 = vextract.low.u32 %v256
    %v258 = vextract.high.u32 %v256
    %v259 = vmul.u32.u64.compose %v255, %v250
    %v260 = vextract.low.u32 %v259
    %v261 = vextract.high.u32 %v259
    %v262 = vmul.u32 %v255, %v246
    %v263 = vadd.s32 %v258, %v260
    %vm264 = vc.u32 %v258, %v260
    %v265 = vadd.s32 %v261, 1
    %v266 = vsel %vm264, %v265, %v261
    %v267 = vadd.s32 %v262, %v266
    %v268 = vadd.s32 %v267, 536870912
    %v269 = vshrl.u32 %v268, 30
    %v270 = vshll.u32 %v269, 30
    %v271 = vsub.s32 %v267, %v270
    %vm272 = vcmp.lt.s32.totalorder %v271, 0
    %v273 = vsub.s32 0, %v271
    %v274 = vsel %vm272, %v273, %v271
    %v275 = vclz %v274
    %v276 = vsub.s32 %v275, 2
    %vm277 = vcmp.gt.s32.totalorder 0, %v276
    %v278 = vsel %vm277, 0, %v276
    %v279 = vsub.s32 32, %v278
    %v280 = vshll.u32 %v271, %v278
    %v281 = vshrl.u32 %v263, %v279
    %v282 = vor.u32 %v280, %v281
    %v283 = vsub.s32 4294967266, %v278
    %v284 = vadd.s32 %v283, 127
    %v285 = vshll.u32 %v284, 23
    %v286 = vor.u32 4788187, %v285
    %v287 = vand.u32 2147483647, %v286
    %v289 = vcvt.s32.f32 %v282
    %v290 = vmul.f32 %v289, %v287
    %v291 = vxor.u32 %v290, 2147483648
    %v292 = vsel %vm209, %v291, %v290
    %v293 = vsub.s32 4, %v269
    %v294 = vsel %vm209, %v293, %v269
    %v295 = vsel %vm208, %v98, %v292
    %v296 = vsel %vm208, 0, %v294
    %v297 = vcosq.f32.pop %v295
    %v298 = vsinq.f32.pop %v295
    %vm299 = vweird.f32 %v98
    %v300 = vadd.s32 %v296, 3
    %v301 = vand.u32 %v300, 3
    %vm302 = vcmp.lt.s32.totalorder %v301, 2
    %vm303 = vcmp.eq.s32.totalorder %v301, 0
    %v304 = vxor.u32 %v298, 2147483648
    %v305 = vsel %vm303, %v297, %v304
    %vm306 = vcmp.eq.s32.totalorder %v301, 2
    %v307 = vxor.u32 %v297, 2147483648
    %v308 = vsel %vm306, %v307, %v298
    %v309 = vsel %vm302, %v305, %v308
    %v310 = vsel %vm299, nan, %v309
    %v311 = vand.u32 2147483647, %v99
    %vm312 = vcmp.le.f32.partialorder %v311, 0.7853982
    %vm313 = vcmp.lt.s32.totalorder %v99, 0
    %v314 = vand.u32 %v99, 2139095040
    %v315 = vshrl.u32 %v314, 23
    %v316 = vsub.s32 %v315, 127
    %v317 = vand.u32 2147483647, %v99
    %v318 = vand.u32 %v317, 8388607
    %v319 = vor.u32 %v318, 8388608
    %v320 = vsub.s32 0, %v319
    %v321 = vadd.s32 %v316, 1
    %vm322 = vcmp.gt.s32.totalorder %v321, 0
    %v323 = vsel %vm322, %v321, 0
    %v324 = vshrl.u32 %v323, 5
    %v325 = vand.u32 %v323, 31
    %v326 = vsub.s32 32, %v325
    %v327 = vshrl.u32 683565275, %v326
    %v328 = vshll.u32 683565275, %v325
    %v329 = vshrl.u32 2475754826, %v326
    %v330 = vor.u32 %v328, %v329
    %v331 = vshll.u32 2475754826, %v325
    %v332 = vshrl.u32 2131351028, %v326
    %v333 = vor.u32 %v331, %v332
    %v334 = vshll.u32 2131351028, %v325
    %v335 = vshrl.u32 2102212464, %v326
    %v336 = vor.u32 %v334, %v335
    %v337 = vshll.u32 2102212464, %v325
    %v338 = vshrl.u32 920167782, %v326
    %v339 = vor.u32 %v337, %v338
    %v340 = vshll.u32 920167782, %v325
    %v341 = vshrl.u32 1326507024, %v326
    %v342 = vor.u32 %v340, %v341
    %vm343 = vcmp.lt.s32.totalorder %v324, 1
    %vm344 = vcmp.lt.s32.totalorder %v324, 2
    %vm345 = vcmp.lt.s32.totalorder %v324, 3
    %vm346 = vcmp.lt.s32.totalorder %v324, 4
    %v347 = vsel %vm343, %v327, %v330
    %v348 = vsel %vm346, %v336, 2102212464
    %v349 = vsel %vm345, %v333, %v348
    %v350 = vsel %vm344, %v347, %v349
    %v351 = vsel %vm343, %v330, %v333
    %v352 = vsel %vm346, %v339, 920167782
    %v353 = vsel %vm345, %v336, %v352
    %v354 = vsel %vm344, %v351, %v353
    %v355 = vsel %vm343, %v333, %v336
    %v356 = vsel %vm346, %v342, 1326507024
    %v357 = vsel %vm345, %v339, %v356
    %v358 = vsel %vm344, %v355, %v357
    %v359 = vshll.u32 %v319, 8
    %v360 = vmul.u32.u64.compose %v359, %v358
    %v361 = vextract.low.u32 %v360
    %v362 = vextract.high.u32 %v360
    %v363 = vmul.u32.u64.compose %v359, %v354
    %v364 = vextract.low.u32 %v363
    %v365 = vextract.high.u32 %v363
    %v366 = vmul.u32 %v359, %v350
    %v367 = vadd.s32 %v362, %v364
    %vm368 = vc.u32 %v362, %v364
    %v369 = vadd.s32 %v365, 1
    %v370 = vsel %vm368, %v369, %v365
    %v371 = vadd.s32 %v366, %v370
    %v372 = vadd.s32 %v371, 536870912
    %v373 = vshrl.u32 %v372, 30
    %v374 = vshll.u32 %v373, 30
    %v375 = vsub.s32 %v371, %v374
    %vm376 = vcmp.lt.s32.totalorder %v375, 0
    %v377 = vsub.s32 0, %v375
    %v378 = vsel %vm376, %v377, %v375
    %v379 = vclz %v378
    %v380 = vsub.s32 %v379, 2
    %vm381 = vcmp.gt.s32.totalorder 0, %v380
    %v382 = vsel %vm381, 0, %v380
    %v383 = vsub.s32 32, %v382
    %v384 = vshll.u32 %v375, %v382
    %v385 = vshrl.u32 %v367, %v383
    %v386 = vor.u32 %v384, %v385
    %v387 = vsub.s32 4294967266, %v382
    %v388 = vadd.s32 %v387, 127
    %v389 = vshll.u32 %v388, 23
    %v390 = vor.u32 4788187, %v389
    %v391 = vand.u32 2147483647, %v390
    %v393 = vcvt.s32.f32 %v386
    %v394 = vmul.f32 %v393, %v391
    %v395 = vxor.u32 %v394, 2147483648
    %v396 = vsel %vm313, %v395, %v394
    %v397 = vsub.s32 4, %v373
    %v398 = vsel %vm313, %v397, %v373
    %v399 = vsel %vm312, %v99, %v396
    %v400 = vsel %vm312, 0, %v398
    %v401 = vcosq.f32.pop %v399
    %v402 = vsinq.f32.pop %v399
    %vm403 = vweird.f32 %v99
    %v404 = vadd.s32 %v400, 3
    %v405 = vand.u32 %v404, 3
    %vm406 = vcmp.lt.s32.totalorder %v405, 2
    %vm407 = vcmp.eq.s32.totalorder %v405, 0
    %v408 = vxor.u32 %v402, 2147483648
    %v409 = vsel %vm407, %v401, %v408
    %vm410 = vcmp.eq.s32.totalorder %v405, 2
    %v411 = vxor.u32 %v401, 2147483648
    %v412 = vsel %vm410, %v411, %v402
    %v413 = vsel %vm406, %v409, %v412
    %v414 = vsel %vm403, nan, %v413
    %v415 = vand.u32 2147483647, %v100
    %vm416 = vcmp.le.f32.partialorder %v415, 0.7853982
    %vm417 = vcmp.lt.s32.totalorder %v100, 0
    %v418 = vand.u32 %v100, 2139095040
    %v419 = vshrl.u32 %v418, 23
    %v420 = vsub.s32 %v419, 127
    %v421 = vand.u32 2147483647, %v100
    %v422 = vand.u32 %v421, 8388607
    %v423 = vor.u32 %v422, 8388608
    %v424 = vsub.s32 0, %v423
    %v425 = vadd.s32 %v420, 1
    %vm426 = vcmp.gt.s32.totalorder %v425, 0
    %v427 = vsel %vm426, %v425, 0
    %v428 = vshrl.u32 %v427, 5
    %v429 = vand.u32 %v427, 31
    %v430 = vsub.s32 32, %v429
    %v431 = vshrl.u32 683565275, %v430
    %v432 = vshll.u32 683565275, %v429
    %v433 = vshrl.u32 2475754826, %v430
    %v434 = vor.u32 %v432, %v433
    %v435 = vshll.u32 2475754826, %v429
    %v436 = vshrl.u32 2131351028, %v430
    %v437 = vor.u32 %v435, %v436
    %v438 = vshll.u32 2131351028, %v429
    %v439 = vshrl.u32 2102212464, %v430
    %v440 = vor.u32 %v438, %v439
    %v441 = vshll.u32 2102212464, %v429
    %v442 = vshrl.u32 920167782, %v430
    %v443 = vor.u32 %v441, %v442
    %v444 = vshll.u32 920167782, %v429
    %v445 = vshrl.u32 1326507024, %v430
    %v446 = vor.u32 %v444, %v445
    %vm447 = vcmp.lt.s32.totalorder %v428, 1
    %vm448 = vcmp.lt.s32.totalorder %v428, 2
    %vm449 = vcmp.lt.s32.totalorder %v428, 3
    %vm450 = vcmp.lt.s32.totalorder %v428, 4
    %v451 = vsel %vm447, %v431, %v434
    %v452 = vsel %vm450, %v440, 2102212464
    %v453 = vsel %vm449, %v437, %v452
    %v454 = vsel %vm448, %v451, %v453
    %v455 = vsel %vm447, %v434, %v437
    %v456 = vsel %vm450, %v443, 920167782
    %v457 = vsel %vm449, %v440, %v456
    %v458 = vsel %vm448, %v455, %v457
    %v459 = vsel %vm447, %v437, %v440
    %v460 = vsel %vm450, %v446, 1326507024
    %v461 = vsel %vm449, %v443, %v460
    %v462 = vsel %vm448, %v459, %v461
    %v463 = vshll.u32 %v423, 8
    %v464 = vmul.u32.u64.compose %v463, %v462
    %v465 = vextract.low.u32 %v464
    %v466 = vextract.high.u32 %v464
    %v467 = vmul.u32.u64.compose %v463, %v458
    %v468 = vextract.low.u32 %v467
    %v469 = vextract.high.u32 %v467
    %v470 = vmul.u32 %v463, %v454
    %v471 = vadd.s32 %v466, %v468
    %vm472 = vc.u32 %v466, %v468
    %v473 = vadd.s32 %v469, 1
    %v474 = vsel %vm472, %v473, %v469
    %v475 = vadd.s32 %v470, %v474
    %v476 = vadd.s32 %v475, 536870912
    %v477 = vshrl.u32 %v476, 30
    %v478 = vshll.u32 %v477, 30
    %v479 = vsub.s32 %v475, %v478
    %vm480 = vcmp.lt.s32.totalorder %v479, 0
    %v481 = vsub.s32 0, %v479
    %v482 = vsel %vm480, %v481, %v479
    %v483 = vclz %v482
    %v484 = vsub.s32 %v483, 2
    %vm485 = vcmp.gt.s32.totalorder 0, %v484
    %v486 = vsel %vm485, 0, %v484
    %v487 = vsub.s32 32, %v486
    %v488 = vshll.u32 %v479, %v486
    %v489 = vshrl.u32 %v471, %v487
    %v490 = vor.u32 %v488, %v489
    %v491 = vsub.s32 4294967266, %v486
    %v492 = vadd.s32 %v491, 127
    %v493 = vshll.u32 %v492, 23
    %v494 = vor.u32 4788187, %v493
    %v495 = vand.u32 2147483647, %v494
    %v497 = vcvt.s32.f32 %v490
    %v498 = vmul.f32 %v497, %v495
    %v499 = vxor.u32 %v498, 2147483648
    %v500 = vsel %vm417, %v499, %v498
    %v501 = vsub.s32 4, %v477
    %v502 = vsel %vm417, %v501, %v477
    %v503 = vsel %vm416, %v100, %v500
    %v504 = vsel %vm416, 0, %v502
    %v505 = vcosq.f32.pop %v503
    %v506 = vsinq.f32.pop %v503
    %vm507 = vweird.f32 %v100
    %v508 = vadd.s32 %v504, 3
    %v509 = vand.u32 %v508, 3
    %vm510 = vcmp.lt.s32.totalorder %v509, 2
    %vm511 = vcmp.eq.s32.totalorder %v509, 0
    %v512 = vxor.u32 %v506, 2147483648
    %v513 = vsel %vm511, %v505, %v512
    %vm514 = vcmp.eq.s32.totalorder %v509, 2
    %v515 = vxor.u32 %v505, 2147483648
    %v516 = vsel %vm514, %v515, %v506
    %v517 = vsel %vm510, %v513, %v516
    %v518 = vsel %vm507, nan, %v517
    %v519 = vand.u32 2147483647, %v101
    %vm520 = vcmp.le.f32.partialorder %v519, 0.7853982
    %vm521 = vcmp.lt.s32.totalorder %v101, 0
    %v522 = vand.u32 %v101, 2139095040
    %v523 = vshrl.u32 %v522, 23
    %v524 = vsub.s32 %v523, 127
    %v525 = vand.u32 2147483647, %v101
    %v526 = vand.u32 %v525, 8388607
    %v527 = vor.u32 %v526, 8388608
    %v528 = vsub.s32 0, %v527
    %v529 = vadd.s32 %v524, 1
    %vm530 = vcmp.gt.s32.totalorder %v529, 0
    %v531 = vsel %vm530, %v529, 0
    %v532 = vshrl.u32 %v531, 5
    %v533 = vand.u32 %v531, 31
    %v534 = vsub.s32 32, %v533
    %v535 = vshrl.u32 683565275, %v534
    %v536 = vshll.u32 683565275, %v533
    %v537 = vshrl.u32 2475754826, %v534
    %v538 = vor.u32 %v536, %v537
    %v539 = vshll.u32 2475754826, %v533
    %v540 = vshrl.u32 2131351028, %v534
    %v541 = vor.u32 %v539, %v540
    %v542 = vshll.u32 2131351028, %v533
    %v543 = vshrl.u32 2102212464, %v534
    %v544 = vor.u32 %v542, %v543
    %v545 = vshll.u32 2102212464, %v533
    %v546 = vshrl.u32 920167782, %v534
    %v547 = vor.u32 %v545, %v546
    %v548 = vshll.u32 920167782, %v533
    %v549 = vshrl.u32 1326507024, %v534
    %v550 = vor.u32 %v548, %v549
    %vm551 = vcmp.lt.s32.totalorder %v532, 1
    %vm552 = vcmp.lt.s32.totalorder %v532, 2
    %vm553 = vcmp.lt.s32.totalorder %v532, 3
    %vm554 = vcmp.lt.s32.totalorder %v532, 4
    %v555 = vsel %vm551, %v535, %v538
    %v556 = vsel %vm554, %v544, 2102212464
    %v557 = vsel %vm553, %v541, %v556
    %v558 = vsel %vm552, %v555, %v557
    %v559 = vsel %vm551, %v538, %v541
    %v560 = vsel %vm554, %v547, 920167782
    %v561 = vsel %vm553, %v544, %v560
    %v562 = vsel %vm552, %v559, %v561
    %v563 = vsel %vm551, %v541, %v544
    %v564 = vsel %vm554, %v550, 1326507024
    %v565 = vsel %vm553, %v547, %v564
    %v566 = vsel %vm552, %v563, %v565
    %v567 = vshll.u32 %v527, 8
    %v568 = vmul.u32.u64.compose %v567, %v566
    %v569 = vextract.low.u32 %v568
    %v570 = vextract.high.u32 %v568
    %v571 = vmul.u32.u64.compose %v567, %v562
    %v572 = vextract.low.u32 %v571
    %v573 = vextract.high.u32 %v571
    %v574 = vmul.u32 %v567, %v558
    %v575 = vadd.s32 %v570, %v572
    %vm576 = vc.u32 %v570, %v572
    %v577 = vadd.s32 %v573, 1
    %v578 = vsel %vm576, %v577, %v573
    %v579 = vadd.s32 %v574, %v578
    %v580 = vadd.s32 %v579, 536870912
    %v581 = vshrl.u32 %v580, 30
    %v582 = vshll.u32 %v581, 30
    %v583 = vsub.s32 %v579, %v582
    %vm584 = vcmp.lt.s32.totalorder %v583, 0
    %v585 = vsub.s32 0, %v583
    %v586 = vsel %vm584, %v585, %v583
    %v587 = vclz %v586
    %v588 = vsub.s32 %v587, 2
    %vm589 = vcmp.gt.s32.totalorder 0, %v588
    %v590 = vsel %vm589, 0, %v588
    %v591 = vsub.s32 32, %v590
    %v592 = vshll.u32 %v583, %v590
    %v593 = vshrl.u32 %v575, %v591
    %v594 = vor.u32 %v592, %v593
    %v595 = vsub.s32 4294967266, %v590
    %v596 = vadd.s32 %v595, 127
    %v597 = vshll.u32 %v596, 23
    %v598 = vor.u32 4788187, %v597
    %v599 = vand.u32 2147483647, %v598
    %v601 = vcvt.s32.f32 %v594
    %v602 = vmul.f32 %v601, %v599
    %v603 = vxor.u32 %v602, 2147483648
    %v604 = vsel %vm521, %v603, %v602
    %v605 = vsub.s32 4, %v581
    %v606 = vsel %vm521, %v605, %v581
    %v607 = vsel %vm520, %v101, %v604
    %v608 = vsel %vm520, 0, %v606
    %v609 = vcosq.f32.pop %v607
    %v610 = vsinq.f32.pop %v607
    %vm611 = vweird.f32 %v101
    %v612 = vadd.s32 %v608, 3
    %v613 = vand.u32 %v612, 3
    %vm614 = vcmp.lt.s32.totalorder %v613, 2
    %vm615 = vcmp.eq.s32.totalorder %v613, 0
    %v616 = vxor.u32 %v610, 2147483648
    %v617 = vsel %vm615, %v609, %v616
    %vm618 = vcmp.eq.s32.totalorder %v613, 2
    %v619 = vxor.u32 %v609, 2147483648
    %v620 = vsel %vm618, %v619, %v610
    %v621 = vsel %vm614, %v617, %v620
    %v622 = vsel %vm611, nan, %v621
    %v623 = vand.u32 2147483647, %v102
    %vm624 = vcmp.le.f32.partialorder %v623, 0.7853982
    %vm625 = vcmp.lt.s32.totalorder %v102, 0
    %v626 = vand.u32 %v102, 2139095040
    %v627 = vshrl.u32 %v626, 23
    %v628 = vsub.s32 %v627, 127
    %v629 = vand.u32 2147483647, %v102
    %v630 = vand.u32 %v629, 8388607
    %v631 = vor.u32 %v630, 8388608
    %v632 = vsub.s32 0, %v631
    %v633 = vadd.s32 %v628, 1
    %vm634 = vcmp.gt.s32.totalorder %v633, 0
    %v635 = vsel %vm634, %v633, 0
    %v636 = vshrl.u32 %v635, 5
    %v637 = vand.u32 %v635, 31
    %v638 = vsub.s32 32, %v637
    %v639 = vshrl.u32 683565275, %v638
    %v640 = vshll.u32 683565275, %v637
    %v641 = vshrl.u32 2475754826, %v638
    %v642 = vor.u32 %v640, %v641
    %v643 = vshll.u32 2475754826, %v637
    %v644 = vshrl.u32 2131351028, %v638
    %v645 = vor.u32 %v643, %v644
    %v646 = vshll.u32 2131351028, %v637
    %v647 = vshrl.u32 2102212464, %v638
    %v648 = vor.u32 %v646, %v647
    %v649 = vshll.u32 2102212464, %v637
    %v650 = vshrl.u32 920167782, %v638
    %v651 = vor.u32 %v649, %v650
    %v652 = vshll.u32 920167782, %v637
    %v653 = vshrl.u32 1326507024, %v638
    %v654 = vor.u32 %v652, %v653
    %vm655 = vcmp.lt.s32.totalorder %v636, 1
    %vm656 = vcmp.lt.s32.totalorder %v636, 2
    %vm657 = vcmp.lt.s32.totalorder %v636, 3
    %vm658 = vcmp.lt.s32.totalorder %v636, 4
    %v659 = vsel %vm655, %v639, %v642
    %v660 = vsel %vm658, %v648, 2102212464
    %v661 = vsel %vm657, %v645, %v660
    %v662 = vsel %vm656, %v659, %v661
    %v663 = vsel %vm655, %v642, %v645
    %v664 = vsel %vm658, %v651, 920167782
    %v665 = vsel %vm657, %v648, %v664
    %v666 = vsel %vm656, %v663, %v665
    %v667 = vsel %vm655, %v645, %v648
    %v668 = vsel %vm658, %v654, 1326507024
    %v669 = vsel %vm657, %v651, %v668
    %v670 = vsel %vm656, %v667, %v669
    %v671 = vshll.u32 %v631, 8
    %v672 = vmul.u32.u64.compose %v671, %v670
    %v673 = vextract.low.u32 %v672
    %v674 = vextract.high.u32 %v672
    %v675 = vmul.u32.u64.compose %v671, %v666
    %v676 = vextract.low.u32 %v675
    %v677 = vextract.high.u32 %v675
    %v678 = vmul.u32 %v671, %v662
    %v679 = vadd.s32 %v674, %v676
    %vm680 = vc.u32 %v674, %v676
    %v681 = vadd.s32 %v677, 1
    %v682 = vsel %vm680, %v681, %v677
    %v683 = vadd.s32 %v678, %v682
    %v684 = vadd.s32 %v683, 536870912
    %v685 = vshrl.u32 %v684, 30
    %v686 = vshll.u32 %v685, 30
    %v687 = vsub.s32 %v683, %v686
    %vm688 = vcmp.lt.s32.totalorder %v687, 0
    %v689 = vsub.s32 0, %v687
    %v690 = vsel %vm688, %v689, %v687
    %v691 = vclz %v690
    %v692 = vsub.s32 %v691, 2
    %vm693 = vcmp.gt.s32.totalorder 0, %v692
    %v694 = vsel %vm693, 0, %v692
    %v695 = vsub.s32 32, %v694
    %v696 = vshll.u32 %v687, %v694
    %v697 = vshrl.u32 %v679, %v695
    %v698 = vor.u32 %v696, %v697
    %v699 = vsub.s32 4294967266, %v694
    %v700 = vadd.s32 %v699, 127
    %v701 = vshll.u32 %v700, 23
    %v702 = vor.u32 4788187, %v701
    %v703 = vand.u32 2147483647, %v702
    %v705 = vcvt.s32.f32 %v698
    %v706 = vmul.f32 %v705, %v703
    %v707 = vxor.u32 %v706, 2147483648
    %v708 = vsel %vm625, %v707, %v706
    %v709 = vsub.s32 4, %v685
    %v710 = vsel %vm625, %v709, %v685
    %v711 = vsel %vm624, %v102, %v708
    %v712 = vsel %vm624, 0, %v710
    %v713 = vcosq.f32.pop %v711
    %v714 = vsinq.f32.pop %v711
    %vm715 = vweird.f32 %v102
    %v716 = vadd.s32 %v712, 3
    %v717 = vand.u32 %v716, 3
    %vm718 = vcmp.lt.s32.totalorder %v717, 2
    %vm719 = vcmp.eq.s32.totalorder %v717, 0
    %v720 = vxor.u32 %v714, 2147483648
    %v721 = vsel %vm719, %v713, %v720
    %vm722 = vcmp.eq.s32.totalorder %v717, 2
    %v723 = vxor.u32 %v713, 2147483648
    %v724 = vsel %vm722, %v723, %v714
    %v725 = vsel %vm718, %v721, %v724
    %v726 = vsel %vm715, nan, %v725
    %v727 = vld [vmem:[%s3] sm:$0xff]
    %v728 = vld [vmem:[%s3 + $0x8] sm:$0xff]
    %v729 = vld [vmem:[%s3 + $0x10] sm:$0xff]
    %v730 = vld [vmem:[%s3 + $0x18] sm:$0xff]
    %v731 = vld [vmem:[%s3 + $0x20] sm:$0xff]
    %v732 = vld [vmem:[%s3 + $0x28] sm:$0xff]
    %v733 = vld [vmem:[%s3 + $0x30] sm:$0xff]
    %v734 = vld [vmem:[%s3 + $0x38] sm:$0xff]
    %v735 = vld [vmem:[%s3 + $0x40] sm:$0xff]
    %v736 = vld [vmem:[%s3 + $0x48] sm:$0xff]
    %v737 = vld [vmem:[%s3 + $0x50] sm:$0xff]
    %v738 = vld [vmem:[%s3 + $0x58] sm:$0xff]
    %v739 = vld [vmem:[%s3 + $0x60] sm:$0xff]
    %v740 = vld [vmem:[%s3 + $0x68] sm:$0xff]
    %v741 = vld [vmem:[%s3 + $0x70] sm:$0xff]
    %v742 = vld [vmem:[%s3 + $0x78] sm:$0xff]
    %v743 = vld [vmem:[%s3 + $0x80] sm:$0xff]
    %v744 = vld [vmem:[%s3 + $0x88] sm:$0xff]
    %v745 = vld [vmem:[%s3 + $0x90] sm:$0xff]
    %v746 = vld [vmem:[%s3 + $0x98] sm:$0xff]
    %v747 = vld [vmem:[%s3 + $0xa0] sm:$0xff]
    %v748 = vld [vmem:[%s3 + $0xa8] sm:$0xff]
    %v749 = vld [vmem:[%s3 + $0xb0] sm:$0xff]
    %v750 = vld [vmem:[%s3 + $0xb8] sm:$0xff]
    %v751 = vld [vmem:[%s3 + $0xc0] sm:$0xff]
    %v752 = vld [vmem:[%s3 + $0xc8] sm:$0xff]
    %v753 = vld [vmem:[%s3 + $0xd0] sm:$0xff]
    %v754 = vld [vmem:[%s3 + $0xd8] sm:$0xff]
    %v755 = vld [vmem:[%s3 + $0xe0] sm:$0xff]
    %v756 = vld [vmem:[%s3 + $0xe8] sm:$0xff]
    %v757 = vld [vmem:[%s3 + $0xf0] sm:$0xff]
    %v758 = vld [vmem:[%s3 + $0xf8] sm:$0xff]
    %v759 = vld [vmem:[%s3 + $0x100] sm:$0xff]
    %v760 = vld [vmem:[%s3 + $0x108] sm:$0xff]
    %v761 = vld [vmem:[%s3 + $0x110] sm:$0xff]
    %v762 = vld [vmem:[%s3 + $0x118] sm:$0xff]
    %v763 = vld [vmem:[%s3 + $0x120] sm:$0xff]
    %v764 = vld [vmem:[%s3 + $0x128] sm:$0xf]
    %v765 = vld [vmem:[%s4] sm:$0x1]
    %v767 = vlaneseq
    %v768 = vshrl.u32 %v767, 7
    %v769 = vsub.s32 0, %v768
    %v770 = vrot.slane %v765, %v769
    %vm772 = vcmask 359424
    %v774 = vsel %vm772, %v414, 0
    %v777 = vsel %vm772, %v726, 0
    %vm779 = vcmask 1043456
    %v781 = vsel %vm779, %v764, 0
    %783 = vmatprep.subr.mxu0 0.0
    %784 = vmatpush1.msra.mxu0 %v742
    %785 = vmatprep.subr.mxu0 0.0
    %786 = vmatpush1.msra.mxu0 %v741
    %787 = vmatprep.subr.mxu0 0.0
    %788 = vmatpush1.msra.mxu0 %v740
    %789 = vmatprep.subr.mxu0 0.0
    %790 = vmatpush1.msra.mxu0 %v739
    %791 = vmatprep.subr.mxu0 0.0
    %792 = vmatpush1.msra.mxu0 %v738
    %793 = vmatprep.subr.mxu0 0.0
    %794 = vmatpush1.msra.mxu0 %v737
    %795 = vmatprep.subr.mxu0 0.0
    %796 = vmatpush1.msra.mxu0 %v736
    %797 = vmatprep.subr.mxu0 0.0
    %798 = vmatpush1.msra.mxu0 %v735
    %799 = vmatprep.subr.mxu0 0.0
    %800 = vmatpush1.msra.mxu0 %v734
    %801 = vmatprep.subr.mxu0 0.0
    %802 = vmatpush1.msra.mxu0 %v733
    %803 = vmatprep.subr.mxu0 0.0
    %804 = vmatpush1.msra.mxu0 %v732
    %805 = vmatprep.subr.mxu0 0.0
    %806 = vmatpush1.msra.mxu0 %v731
    %807 = vmatprep.subr.mxu0 0.0
    %808 = vmatpush1.msra.mxu0 %v730
    %809 = vmatprep.subr.mxu0 0.0
    %810 = vmatpush1.msra.mxu0 %v729
    %811 = vmatprep.subr.mxu0 0.0
    %812 = vmatpush1.msra.mxu0 %v728
    %813 = vmatprep.subr.mxu0 0.0
    %814 = vmatpush1.msra.mxu0 %v727
    %815 = vmatprep.subr.mxu0 0.0
    %816 = vmatpush2.msra.mxu0 %v758
    %817 = vmatprep.subr.mxu0 0.0
    %818 = vmatpush2.msra.mxu0 %v757
    %819 = vmatprep.subr.mxu0 0.0
    %820 = vmatpush2.msra.mxu0 %v756
    %821 = vmatprep.subr.mxu0 0.0
    %822 = vmatpush2.msra.mxu0 %v755
    %823 = vmatprep.subr.mxu0 0.0
    %824 = vmatpush2.msra.mxu0 %v754
    %825 = vmatprep.subr.mxu0 0.0
    %826 = vmatpush2.msra.mxu0 %v753
    %827 = vmatprep.subr.mxu0 0.0
    %828 = vmatpush2.msra.mxu0 %v752
    %829 = vmatprep.subr.mxu0 0.0
    %830 = vmatpush2.msra.mxu0 %v751
    %831 = vmatprep.subr.mxu0 0.0
    %832 = vmatpush2.msra.mxu0 %v750
    %833 = vmatprep.subr.mxu0 0.0
    %834 = vmatpush2.msra.mxu0 %v749
    %835 = vmatprep.subr.mxu0 0.0
    %836 = vmatpush2.msra.mxu0 %v748
    %837 = vmatprep.subr.mxu0 0.0
    %838 = vmatpush2.msra.mxu0 %v747
    %839 = vmatprep.subr.mxu0 0.0
    %840 = vmatpush2.msra.mxu0 %v746
    %841 = vmatprep.subr.mxu0 0.0
    %842 = vmatpush2.msra.mxu0 %v745
    %843 = vmatprep.subr.mxu0 0.0
    %844 = vmatpush2.msra.mxu0 %v744
    %845 = vmatprep.subr.mxu0 0.0
    %846 = vmatpush2.msra.mxu0 %v743
    %847 = vmatprep.mubr.f32.mxu0 %v310
    %848 = vmatmul.mubr.f32.gmra.mxu0 %v206
    %v849 = vpop.f32.mrf.mxu0
    %v850 = vadd.f32 %v770, %v849
    %v851 = vpop.f32.mrf.mxu0
    %852 = vmatprep.mubr.f32.mxu0 %v622
    %853 = vmatmul.mubr.f32.gmra.mxu0 %v518
    %v854 = vpop.f32.mrf.mxu0
    %v855 = vadd.f32 %v770, %v854
    %v856 = vpop.f32.mrf.mxu0
    %857 = vdwg.mxu0
    %858 = vmatprep.subr.mxu0 0.0
    %859 = vmatpush1.msra.mxu0 0.0
    %860 = vmatprep.subr.mxu0 0.0
    %861 = vmatpush1.msra.mxu0 0.0
    %862 = vmatprep.subr.mxu0 0.0
    %863 = vmatpush1.msra.mxu0 0.0
    %864 = vmatprep.subr.mxu0 0.0
    %865 = vmatpush1.msra.mxu0 0.0
    %866 = vmatprep.subr.mxu0 0.0
    %867 = vmatpush1.msra.mxu0 0.0
    %868 = vmatprep.subr.mxu0 0.0
    %869 = vmatpush1.msra.mxu0 0.0
    %870 = vmatprep.subr.mxu0 0.0
    %871 = vmatpush1.msra.mxu0 0.0
    %872 = vmatprep.subr.mxu0 0.0
    %873 = vmatpush1.msra.mxu0 0.0
    %874 = vmatprep.subr.mxu0 0.0
    %875 = vmatpush1.msra.mxu0 0.0
    %876 = vmatprep.subr.mxu0 0.0
    %877 = vmatpush1.msra.mxu0 0.0
    %878 = vmatprep.subr.mxu0 0.0
    %879 = vmatpush1.msra.mxu0 %v781
    %880 = vmatprep.subr.mxu0 0.0
    %881 = vmatpush1.msra.mxu0 %v763
    %882 = vmatprep.subr.mxu0 0.0
    %883 = vmatpush1.msra.mxu0 %v762
    %884 = vmatprep.subr.mxu0 0.0
    %885 = vmatpush1.msra.mxu0 %v761
    %886 = vmatprep.subr.mxu0 0.0
    %887 = vmatpush1.msra.mxu0 %v760
    %888 = vmatprep.subr.mxu0 0.0
    %889 = vmatpush1.msra.mxu0 %v759
    %890 = vmatprep.subr.mxu0 0.0
    %891 = vmatpush2.msra.mxu0 0.0
    %892 = vmatprep.subr.mxu0 0.0
    %893 = vmatpush2.msra.mxu0 0.0
    %894 = vmatprep.subr.mxu0 0.0
    %895 = vmatpush2.msra.mxu0 0.0
    %896 = vmatprep.subr.mxu0 0.0
    %897 = vmatpush2.msra.mxu0 0.0
    %898 = vmatprep.subr.mxu0 0.0
    %899 = vmatpush2.msra.mxu0 0.0
    %900 = vmatprep.subr.mxu0 0.0
    %901 = vmatpush2.msra.mxu0 0.0
    %902 = vmatprep.subr.mxu0 0.0
    %903 = vmatpush2.msra.mxu0 0.0
    %904 = vmatprep.subr.mxu0 0.0
    %905 = vmatpush2.msra.mxu0 0.0
    %906 = vmatprep.subr.mxu0 0.0
    %907 = vmatpush2.msra.mxu0 0.0
    %908 = vmatprep.subr.mxu0 0.0
    %909 = vmatpush2.msra.mxu0 0.0
    %910 = vmatprep.subr.mxu0 0.0
    %911 = vmatpush2.msra.mxu0 0.0
    %912 = vmatprep.subr.mxu0 0.0
    %913 = vmatpush2.msra.mxu0 0.0
    %914 = vmatprep.subr.mxu0 0.0
    %915 = vmatpush2.msra.mxu0 0.0
    %916 = vmatprep.subr.mxu0 0.0
    %917 = vmatpush2.msra.mxu0 0.0
    %918 = vmatprep.subr.mxu0 0.0
    %919 = vmatpush2.msra.mxu0 0.0
    %920 = vmatprep.subr.mxu0 0.0
    %921 = vmatpush2.msra.mxu0 0.0
    %922 = vmatprep.mubr.f32.mxu0 0.0
    %923 = vmatmul.mubr.f32.gmra.mxu0 %v774
    %v924 = vpop.f32.mrf.mxu0
    %v925 = vadd.f32 %v850, %v924
    %v926 = vpop.f32.mrf.mxu0
    %927 = vmatprep.mubr.f32.mxu0 0.0
    %928 = vmatmul.mubr.f32.gmra.mxu0 %v777
    %v929 = vpop.f32.mrf.mxu0
    %v930 = vadd.f32 %v855, %v929
    %v931 = vpop.f32.mrf.mxu0
    %932 = vdwg.mxu0
    %vm933 = vcmask 261120
    %934 = vst.msk [vmem:[#allocation2] sm:$0xff] %vm933, %v925
    %935 = vst.msk [vmem:[#allocation2 + $0x8] sm:$0xff] %vm933, %v930
    %v936 = vld [vmem:[%s5] sm:$0xff]
    %v937 = vld [vmem:[%s5 + $0x8] sm:$0xff]
    %v938 = vld [vmem:[%s6] sm:$0x7]
    %940 = vset.pattern.permute.xlu0 0
    %941 = vperm.xlu0 %940, %v936
    %v942 = vpop.permute.xlu0 %941
    %945 = vset.pattern.permute.xlu0 0
    %946 = vperm.xlu0 %945, %v937
    %v947 = vpop.permute.xlu0 %946
    %v950 = vlaneseq
    %v951 = vshrl.u32 %v950, 7
    %v952 = vsub.s32 0, %v951
    %v953 = vrot.slane %v938, %v952
    %v954 = vlaneseq
    %v955 = vshrl.u32 %v954, 7
    %v956 = vsub.s32 1, %v955
    %v957 = vrot.slane %v938, %v956
    %v958 = vlaneseq
    %v959 = vshrl.u32 %v958, 7
    %v960 = vsub.s32 2, %v959
    %v961 = vrot.slane %v938, %v960
    %v965 = vmul.f32 %v942, %v953
    %v966 = vmul.f32 %v942, %v957
    %v967 = vmul.f32 %v942, %v961
    %v968 = vmul.f32 %v947, %v953
    %v969 = vmul.f32 %v947, %v957
    %v970 = vmul.f32 %v947, %v961
    %v971 = vld [vmem:[%s7] sm:$0x7]
    %v973 = vlaneseq
    %v974 = vshrl.u32 %v973, 7
    %v975 = vsub.s32 0, %v974
    %v976 = vrot.slane %v971, %v975
    %v977 = vlaneseq
    %v978 = vshrl.u32 %v977, 7
    %v979 = vsub.s32 1, %v978
    %v980 = vrot.slane %v971, %v979
    %v981 = vlaneseq
    %v982 = vshrl.u32 %v981, 7
    %v983 = vsub.s32 2, %v982
    %v984 = vrot.slane %v971, %v983
    %v988 = vadd.f32 %v965, %v976
    %v989 = vadd.f32 %v966, %v980
    %v990 = vadd.f32 %v967, %v984
    %v991 = vadd.f32 %v968, %v976
    %v992 = vadd.f32 %v969, %v980
    %v993 = vadd.f32 %v970, %v984
    %v994 = vmul.f32 %v988, 30.0
    %v995 = vmul.f32 %v989, 30.0
    %v996 = vmul.f32 %v990, 30.0
    %v997 = vmul.f32 %v991, 30.0
    %v998 = vmul.f32 %v992, 30.0
    %v999 = vmul.f32 %v993, 30.0
    %v1000 = vand.u32 2147483647, %v994
    %vm1001 = vcmp.le.f32.partialorder %v1000, 0.7853982
    %vm1002 = vcmp.lt.s32.totalorder %v994, 0
    %v1003 = vand.u32 %v994, 2139095040
    %v1004 = vshrl.u32 %v1003, 23
    %v1005 = vsub.s32 %v1004, 127
    %v1006 = vand.u32 2147483647, %v994
    %v1007 = vand.u32 %v1006, 8388607
    %v1008 = vor.u32 %v1007, 8388608
    %v1009 = vsub.s32 0, %v1008
    %v1010 = vadd.s32 %v1005, 1
    %vm1011 = vcmp.gt.s32.totalorder %v1010, 0
    %v1012 = vsel %vm1011, %v1010, 0
    %v1013 = vshrl.u32 %v1012, 5
    %v1014 = vand.u32 %v1012, 31
    %v1015 = vsub.s32 32, %v1014
    %v1016 = vshrl.u32 683565275, %v1015
    %v1017 = vshll.u32 683565275, %v1014
    %v1018 = vshrl.u32 2475754826, %v1015
    %v1019 = vor.u32 %v1017, %v1018
    %v1020 = vshll.u32 2475754826, %v1014
    %v1021 = vshrl.u32 2131351028, %v1015
    %v1022 = vor.u32 %v1020, %v1021
    %v1023 = vshll.u32 2131351028, %v1014
    %v1024 = vshrl.u32 2102212464, %v1015
    %v1025 = vor.u32 %v1023, %v1024
    %v1026 = vshll.u32 2102212464, %v1014
    %v1027 = vshrl.u32 920167782, %v1015
    %v1028 = vor.u32 %v1026, %v1027
    %v1029 = vshll.u32 920167782, %v1014
    %v1030 = vshrl.u32 1326507024, %v1015
    %v1031 = vor.u32 %v1029, %v1030
    %vm1032 = vcmp.lt.s32.totalorder %v1013, 1
    %vm1033 = vcmp.lt.s32.totalorder %v1013, 2
    %vm1034 = vcmp.lt.s32.totalorder %v1013, 3
    %vm1035 = vcmp.lt.s32.totalorder %v1013, 4
    %v1036 = vsel %vm1032, %v1016, %v1019
    %v1037 = vsel %vm1035, %v1025, 2102212464
    %v1038 = vsel %vm1034, %v1022, %v1037
    %v1039 = vsel %vm1033, %v1036, %v1038
    %v1040 = vsel %vm1032, %v1019, %v1022
    %v1041 = vsel %vm1035, %v1028, 920167782
    %v1042 = vsel %vm1034, %v1025, %v1041
    %v1043 = vsel %vm1033, %v1040, %v1042
    %v1044 = vsel %vm1032, %v1022, %v1025
    %v1045 = vsel %vm1035, %v1031, 1326507024
    %v1046 = vsel %vm1034, %v1028, %v1045
    %v1047 = vsel %vm1033, %v1044, %v1046
    %v1048 = vshll.u32 %v1008, 8
    %v1049 = vmul.u32.u64.compose %v1048, %v1047
    %v1050 = vextract.low.u32 %v1049
    %v1051 = vextract.high.u32 %v1049
    %v1052 = vmul.u32.u64.compose %v1048, %v1043
    %v1053 = vextract.low.u32 %v1052
    %v1054 = vextract.high.u32 %v1052
    %v1055 = vmul.u32 %v1048, %v1039
    %v1056 = vadd.s32 %v1051, %v1053
    %vm1057 = vc.u32 %v1051, %v1053
    %v1058 = vadd.s32 %v1054, 1
    %v1059 = vsel %vm1057, %v1058, %v1054
    %v1060 = vadd.s32 %v1055, %v1059
    %v1061 = vadd.s32 %v1060, 536870912
    %v1062 = vshrl.u32 %v1061, 30
    %v1063 = vshll.u32 %v1062, 30
    %v1064 = vsub.s32 %v1060, %v1063
    %vm1065 = vcmp.lt.s32.totalorder %v1064, 0
    %v1066 = vsub.s32 0, %v1064
    %v1067 = vsel %vm1065, %v1066, %v1064
    %v1068 = vclz %v1067
    %v1069 = vsub.s32 %v1068, 2
    %vm1070 = vcmp.gt.s32.totalorder 0, %v1069
    %v1071 = vsel %vm1070, 0, %v1069
    %v1072 = vsub.s32 32, %v1071
    %v1073 = vshll.u32 %v1064, %v1071
    %v1074 = vshrl.u32 %v1056, %v1072
    %v1075 = vor.u32 %v1073, %v1074
    %v1076 = vsub.s32 4294967266, %v1071
    %v1077 = vadd.s32 %v1076, 127
    %v1078 = vshll.u32 %v1077, 23
    %v1079 = vor.u32 4788187, %v1078
    %v1080 = vand.u32 2147483647, %v1079
    %v1082 = vcvt.s32.f32 %v1075
    %v1083 = vmul.f32 %v1082, %v1080
    %v1084 = vxor.u32 %v1083, 2147483648
    %v1085 = vsel %vm1002, %v1084, %v1083
    %v1086 = vsub.s32 4, %v1062
    %v1087 = vsel %vm1002, %v1086, %v1062
    %v1088 = vsel %vm1001, %v994, %v1085
    %v1089 = vsel %vm1001, 0, %v1087
    %v1090 = vcosq.f32.pop %v1088
    %v1091 = vsinq.f32.pop %v1088
    %vm1092 = vweird.f32 %v994
    %v1093 = vadd.s32 %v1089, 3
    %v1094 = vand.u32 %v1093, 3
    %vm1095 = vcmp.lt.s32.totalorder %v1094, 2
    %vm1096 = vcmp.eq.s32.totalorder %v1094, 0
    %v1097 = vxor.u32 %v1091, 2147483648
    %v1098 = vsel %vm1096, %v1090, %v1097
    %vm1099 = vcmp.eq.s32.totalorder %v1094, 2
    %v1100 = vxor.u32 %v1090, 2147483648
    %v1101 = vsel %vm1099, %v1100, %v1091
    %v1102 = vsel %vm1095, %v1098, %v1101
    %v1103 = vsel %vm1092, nan, %v1102
    %v1104 = vand.u32 2147483647, %v995
    %vm1105 = vcmp.le.f32.partialorder %v1104, 0.7853982
    %vm1106 = vcmp.lt.s32.totalorder %v995, 0
    %v1107 = vand.u32 %v995, 2139095040
    %v1108 = vshrl.u32 %v1107, 23
    %v1109 = vsub.s32 %v1108, 127
    %v1110 = vand.u32 2147483647, %v995
    %v1111 = vand.u32 %v1110, 8388607
    %v1112 = vor.u32 %v1111, 8388608
    %v1113 = vsub.s32 0, %v1112
    %v1114 = vadd.s32 %v1109, 1
    %vm1115 = vcmp.gt.s32.totalorder %v1114, 0
    %v1116 = vsel %vm1115, %v1114, 0
    %v1117 = vshrl.u32 %v1116, 5
    %v1118 = vand.u32 %v1116, 31
    %v1119 = vsub.s32 32, %v1118
    %v1120 = vshrl.u32 683565275, %v1119
    %v1121 = vshll.u32 683565275, %v1118
    %v1122 = vshrl.u32 2475754826, %v1119
    %v1123 = vor.u32 %v1121, %v1122
    %v1124 = vshll.u32 2475754826, %v1118
    %v1125 = vshrl.u32 2131351028, %v1119
    %v1126 = vor.u32 %v1124, %v1125
    %v1127 = vshll.u32 2131351028, %v1118
    %v1128 = vshrl.u32 2102212464, %v1119
    %v1129 = vor.u32 %v1127, %v1128
    %v1130 = vshll.u32 2102212464, %v1118
    %v1131 = vshrl.u32 920167782, %v1119
    %v1132 = vor.u32 %v1130, %v1131
    %v1133 = vshll.u32 920167782, %v1118
    %v1134 = vshrl.u32 1326507024, %v1119
    %v1135 = vor.u32 %v1133, %v1134
    %vm1136 = vcmp.lt.s32.totalorder %v1117, 1
    %vm1137 = vcmp.lt.s32.totalorder %v1117, 2
    %vm1138 = vcmp.lt.s32.totalorder %v1117, 3
    %vm1139 = vcmp.lt.s32.totalorder %v1117, 4
    %v1140 = vsel %vm1136, %v1120, %v1123
    %v1141 = vsel %vm1139, %v1129, 2102212464
    %v1142 = vsel %vm1138, %v1126, %v1141
    %v1143 = vsel %vm1137, %v1140, %v1142
    %v1144 = vsel %vm1136, %v1123, %v1126
    %v1145 = vsel %vm1139, %v1132, 920167782
    %v1146 = vsel %vm1138, %v1129, %v1145
    %v1147 = vsel %vm1137, %v1144, %v1146
    %v1148 = vsel %vm1136, %v1126, %v1129
    %v1149 = vsel %vm1139, %v1135, 1326507024
    %v1150 = vsel %vm1138, %v1132, %v1149
    %v1151 = vsel %vm1137, %v1148, %v1150
    %v1152 = vshll.u32 %v1112, 8
    %v1153 = vmul.u32.u64.compose %v1152, %v1151
    %v1154 = vextract.low.u32 %v1153
    %v1155 = vextract.high.u32 %v1153
    %v1156 = vmul.u32.u64.compose %v1152, %v1147
    %v1157 = vextract.low.u32 %v1156
    %v1158 = vextract.high.u32 %v1156
    %v1159 = vmul.u32 %v1152, %v1143
    %v1160 = vadd.s32 %v1155, %v1157
    %vm1161 = vc.u32 %v1155, %v1157
    %v1162 = vadd.s32 %v1158, 1
    %v1163 = vsel %vm1161, %v1162, %v1158
    %v1164 = vadd.s32 %v1159, %v1163
    %v1165 = vadd.s32 %v1164, 536870912
    %v1166 = vshrl.u32 %v1165, 30
    %v1167 = vshll.u32 %v1166, 30
    %v1168 = vsub.s32 %v1164, %v1167
    %vm1169 = vcmp.lt.s32.totalorder %v1168, 0
    %v1170 = vsub.s32 0, %v1168
    %v1171 = vsel %vm1169, %v1170, %v1168
    %v1172 = vclz %v1171
    %v1173 = vsub.s32 %v1172, 2
    %vm1174 = vcmp.gt.s32.totalorder 0, %v1173
    %v1175 = vsel %vm1174, 0, %v1173
    %v1176 = vsub.s32 32, %v1175
    %v1177 = vshll.u32 %v1168, %v1175
    %v1178 = vshrl.u32 %v1160, %v1176
    %v1179 = vor.u32 %v1177, %v1178
    %v1180 = vsub.s32 4294967266, %v1175
    %v1181 = vadd.s32 %v1180, 127
    %v1182 = vshll.u32 %v1181, 23
    %v1183 = vor.u32 4788187, %v1182
    %v1184 = vand.u32 2147483647, %v1183
    %v1186 = vcvt.s32.f32 %v1179
    %v1187 = vmul.f32 %v1186, %v1184
    %v1188 = vxor.u32 %v1187, 2147483648
    %v1189 = vsel %vm1106, %v1188, %v1187
    %v1190 = vsub.s32 4, %v1166
    %v1191 = vsel %vm1106, %v1190, %v1166
    %v1192 = vsel %vm1105, %v995, %v1189
    %v1193 = vsel %vm1105, 0, %v1191
    %v1194 = vcosq.f32.pop %v1192
    %v1195 = vsinq.f32.pop %v1192
    %vm1196 = vweird.f32 %v995
    %v1197 = vadd.s32 %v1193, 3
    %v1198 = vand.u32 %v1197, 3
    %vm1199 = vcmp.lt.s32.totalorder %v1198, 2
    %vm1200 = vcmp.eq.s32.totalorder %v1198, 0
    %v1201 = vxor.u32 %v1195, 2147483648
    %v1202 = vsel %vm1200, %v1194, %v1201
    %vm1203 = vcmp.eq.s32.totalorder %v1198, 2
    %v1204 = vxor.u32 %v1194, 2147483648
    %v1205 = vsel %vm1203, %v1204, %v1195
    %v1206 = vsel %vm1199, %v1202, %v1205
    %v1207 = vsel %vm1196, nan, %v1206
    %v1208 = vand.u32 2147483647, %v996
    %vm1209 = vcmp.le.f32.partialorder %v1208, 0.7853982
    %vm1210 = vcmp.lt.s32.totalorder %v996, 0
    %v1211 = vand.u32 %v996, 2139095040
    %v1212 = vshrl.u32 %v1211, 23
    %v1213 = vsub.s32 %v1212, 127
    %v1214 = vand.u32 2147483647, %v996
    %v1215 = vand.u32 %v1214, 8388607
    %v1216 = vor.u32 %v1215, 8388608
    %v1217 = vsub.s32 0, %v1216
    %v1218 = vadd.s32 %v1213, 1
    %vm1219 = vcmp.gt.s32.totalorder %v1218, 0
    %v1220 = vsel %vm1219, %v1218, 0
    %v1221 = vshrl.u32 %v1220, 5
    %v1222 = vand.u32 %v1220, 31
    %v1223 = vsub.s32 32, %v1222
    %v1224 = vshrl.u32 683565275, %v1223
    %v1225 = vshll.u32 683565275, %v1222
    %v1226 = vshrl.u32 2475754826, %v1223
    %v1227 = vor.u32 %v1225, %v1226
    %v1228 = vshll.u32 2475754826, %v1222
    %v1229 = vshrl.u32 2131351028, %v1223
    %v1230 = vor.u32 %v1228, %v1229
    %v1231 = vshll.u32 2131351028, %v1222
    %v1232 = vshrl.u32 2102212464, %v1223
    %v1233 = vor.u32 %v1231, %v1232
    %v1234 = vshll.u32 2102212464, %v1222
    %v1235 = vshrl.u32 920167782, %v1223
    %v1236 = vor.u32 %v1234, %v1235
    %v1237 = vshll.u32 920167782, %v1222
    %v1238 = vshrl.u32 1326507024, %v1223
    %v1239 = vor.u32 %v1237, %v1238
    %vm1240 = vcmp.lt.s32.totalorder %v1221, 1
    %vm1241 = vcmp.lt.s32.totalorder %v1221, 2
    %vm1242 = vcmp.lt.s32.totalorder %v1221, 3
    %vm1243 = vcmp.lt.s32.totalorder %v1221, 4
    %v1244 = vsel %vm1240, %v1224, %v1227
    %v1245 = vsel %vm1243, %v1233, 2102212464
    %v1246 = vsel %vm1242, %v1230, %v1245
    %v1247 = vsel %vm1241, %v1244, %v1246
    %v1248 = vsel %vm1240, %v1227, %v1230
    %v1249 = vsel %vm1243, %v1236, 920167782
    %v1250 = vsel %vm1242, %v1233, %v1249
    %v1251 = vsel %vm1241, %v1248, %v1250
    %v1252 = vsel %vm1240, %v1230, %v1233
    %v1253 = vsel %vm1243, %v1239, 1326507024
    %v1254 = vsel %vm1242, %v1236, %v1253
    %v1255 = vsel %vm1241, %v1252, %v1254
    %v1256 = vshll.u32 %v1216, 8
    %v1257 = vmul.u32.u64.compose %v1256, %v1255
    %v1258 = vextract.low.u32 %v1257
    %v1259 = vextract.high.u32 %v1257
    %v1260 = vmul.u32.u64.compose %v1256, %v1251
    %v1261 = vextract.low.u32 %v1260
    %v1262 = vextract.high.u32 %v1260
    %v1263 = vmul.u32 %v1256, %v1247
    %v1264 = vadd.s32 %v1259, %v1261
    %vm1265 = vc.u32 %v1259, %v1261
    %v1266 = vadd.s32 %v1262, 1
    %v1267 = vsel %vm1265, %v1266, %v1262
    %v1268 = vadd.s32 %v1263, %v1267
    %v1269 = vadd.s32 %v1268, 536870912
    %v1270 = vshrl.u32 %v1269, 30
    %v1271 = vshll.u32 %v1270, 30
    %v1272 = vsub.s32 %v1268, %v1271
    %vm1273 = vcmp.lt.s32.totalorder %v1272, 0
    %v1274 = vsub.s32 0, %v1272
    %v1275 = vsel %vm1273, %v1274, %v1272
    %v1276 = vclz %v1275
    %v1277 = vsub.s32 %v1276, 2
    %vm1278 = vcmp.gt.s32.totalorder 0, %v1277
    %v1279 = vsel %vm1278, 0, %v1277
    %v1280 = vsub.s32 32, %v1279
    %v1281 = vshll.u32 %v1272, %v1279
    %v1282 = vshrl.u32 %v1264, %v1280
    %v1283 = vor.u32 %v1281, %v1282
    %v1284 = vsub.s32 4294967266, %v1279
    %v1285 = vadd.s32 %v1284, 127
    %v1286 = vshll.u32 %v1285, 23
    %v1287 = vor.u32 4788187, %v1286
    %v1288 = vand.u32 2147483647, %v1287
    %v1290 = vcvt.s32.f32 %v1283
    %v1291 = vmul.f32 %v1290, %v1288
    %v1292 = vxor.u32 %v1291, 2147483648
    %v1293 = vsel %vm1210, %v1292, %v1291
    %v1294 = vsub.s32 4, %v1270
    %v1295 = vsel %vm1210, %v1294, %v1270
    %v1296 = vsel %vm1209, %v996, %v1293
    %v1297 = vsel %vm1209, 0, %v1295
    %v1298 = vcosq.f32.pop %v1296
    %v1299 = vsinq.f32.pop %v1296
    %vm1300 = vweird.f32 %v996
    %v1301 = vadd.s32 %v1297, 3
    %v1302 = vand.u32 %v1301, 3
    %vm1303 = vcmp.lt.s32.totalorder %v1302, 2
    %vm1304 = vcmp.eq.s32.totalorder %v1302, 0
    %v1305 = vxor.u32 %v1299, 2147483648
    %v1306 = vsel %vm1304, %v1298, %v1305
    %vm1307 = vcmp.eq.s32.totalorder %v1302, 2
    %v1308 = vxor.u32 %v1298, 2147483648
    %v1309 = vsel %vm1307, %v1308, %v1299
    %v1310 = vsel %vm1303, %v1306, %v1309
    %v1311 = vsel %vm1300, nan, %v1310
    %v1312 = vand.u32 2147483647, %v997
    %vm1313 = vcmp.le.f32.partialorder %v1312, 0.7853982
    %vm1314 = vcmp.lt.s32.totalorder %v997, 0
    %v1315 = vand.u32 %v997, 2139095040
    %v1316 = vshrl.u32 %v1315, 23
    %v1317 = vsub.s32 %v1316, 127
    %v1318 = vand.u32 2147483647, %v997
    %v1319 = vand.u32 %v1318, 8388607
    %v1320 = vor.u32 %v1319, 8388608
    %v1321 = vsub.s32 0, %v1320
    %v1322 = vadd.s32 %v1317, 1
    %vm1323 = vcmp.gt.s32.totalorder %v1322, 0
    %v1324 = vsel %vm1323, %v1322, 0
    %v1325 = vshrl.u32 %v1324, 5
    %v1326 = vand.u32 %v1324, 31
    %v1327 = vsub.s32 32, %v1326
    %v1328 = vshrl.u32 683565275, %v1327
    %v1329 = vshll.u32 683565275, %v1326
    %v1330 = vshrl.u32 2475754826, %v1327
    %v1331 = vor.u32 %v1329, %v1330
    %v1332 = vshll.u32 2475754826, %v1326
    %v1333 = vshrl.u32 2131351028, %v1327
    %v1334 = vor.u32 %v1332, %v1333
    %v1335 = vshll.u32 2131351028, %v1326
    %v1336 = vshrl.u32 2102212464, %v1327
    %v1337 = vor.u32 %v1335, %v1336
    %v1338 = vshll.u32 2102212464, %v1326
    %v1339 = vshrl.u32 920167782, %v1327
    %v1340 = vor.u32 %v1338, %v1339
    %v1341 = vshll.u32 920167782, %v1326
    %v1342 = vshrl.u32 1326507024, %v1327
    %v1343 = vor.u32 %v1341, %v1342
    %vm1344 = vcmp.lt.s32.totalorder %v1325, 1
    %vm1345 = vcmp.lt.s32.totalorder %v1325, 2
    %vm1346 = vcmp.lt.s32.totalorder %v1325, 3
    %vm1347 = vcmp.lt.s32.totalorder %v1325, 4
    %v1348 = vsel %vm1344, %v1328, %v1331
    %v1349 = vsel %vm1347, %v1337, 2102212464
    %v1350 = vsel %vm1346, %v1334, %v1349
    %v1351 = vsel %vm1345, %v1348, %v1350
    %v1352 = vsel %vm1344, %v1331, %v1334
    %v1353 = vsel %vm1347, %v1340, 920167782
    %v1354 = vsel %vm1346, %v1337, %v1353
    %v1355 = vsel %vm1345, %v1352, %v1354
    %v1356 = vsel %vm1344, %v1334, %v1337
    %v1357 = vsel %vm1347, %v1343, 1326507024
    %v1358 = vsel %vm1346, %v1340, %v1357
    %v1359 = vsel %vm1345, %v1356, %v1358
    %v1360 = vshll.u32 %v1320, 8
    %v1361 = vmul.u32.u64.compose %v1360, %v1359
    %v1362 = vextract.low.u32 %v1361
    %v1363 = vextract.high.u32 %v1361
    %v1364 = vmul.u32.u64.compose %v1360, %v1355
    %v1365 = vextract.low.u32 %v1364
    %v1366 = vextract.high.u32 %v1364
    %v1367 = vmul.u32 %v1360, %v1351
    %v1368 = vadd.s32 %v1363, %v1365
    %vm1369 = vc.u32 %v1363, %v1365
    %v1370 = vadd.s32 %v1366, 1
    %v1371 = vsel %vm1369, %v1370, %v1366
    %v1372 = vadd.s32 %v1367, %v1371
    %v1373 = vadd.s32 %v1372, 536870912
    %v1374 = vshrl.u32 %v1373, 30
    %v1375 = vshll.u32 %v1374, 30
    %v1376 = vsub.s32 %v1372, %v1375
    %vm1377 = vcmp.lt.s32.totalorder %v1376, 0
    %v1378 = vsub.s32 0, %v1376
    %v1379 = vsel %vm1377, %v1378, %v1376
    %v1380 = vclz %v1379
    %v1381 = vsub.s32 %v1380, 2
    %vm1382 = vcmp.gt.s32.totalorder 0, %v1381
    %v1383 = vsel %vm1382, 0, %v1381
    %v1384 = vsub.s32 32, %v1383
    %v1385 = vshll.u32 %v1376, %v1383
    %v1386 = vshrl.u32 %v1368, %v1384
    %v1387 = vor.u32 %v1385, %v1386
    %v1388 = vsub.s32 4294967266, %v1383
    %v1389 = vadd.s32 %v1388, 127
    %v1390 = vshll.u32 %v1389, 23
    %v1391 = vor.u32 4788187, %v1390
    %v1392 = vand.u32 2147483647, %v1391
    %v1394 = vcvt.s32.f32 %v1387
    %v1395 = vmul.f32 %v1394, %v1392
    %v1396 = vxor.u32 %v1395, 2147483648
    %v1397 = vsel %vm1314, %v1396, %v1395
    %v1398 = vsub.s32 4, %v1374
    %v1399 = vsel %vm1314, %v1398, %v1374
    %v1400 = vsel %vm1313, %v997, %v1397
    %v1401 = vsel %vm1313, 0, %v1399
    %v1402 = vcosq.f32.pop %v1400
    %v1403 = vsinq.f32.pop %v1400
    %vm1404 = vweird.f32 %v997
    %v1405 = vadd.s32 %v1401, 3
    %v1406 = vand.u32 %v1405, 3
    %vm1407 = vcmp.lt.s32.totalorder %v1406, 2
    %vm1408 = vcmp.eq.s32.totalorder %v1406, 0
    %v1409 = vxor.u32 %v1403, 2147483648
    %v1410 = vsel %vm1408, %v1402, %v1409
    %vm1411 = vcmp.eq.s32.totalorder %v1406, 2
    %v1412 = vxor.u32 %v1402, 2147483648
    %v1413 = vsel %vm1411, %v1412, %v1403
    %v1414 = vsel %vm1407, %v1410, %v1413
    %v1415 = vsel %vm1404, nan, %v1414
    %v1416 = vand.u32 2147483647, %v998
    %vm1417 = vcmp.le.f32.partialorder %v1416, 0.7853982
    %vm1418 = vcmp.lt.s32.totalorder %v998, 0
    %v1419 = vand.u32 %v998, 2139095040
    %v1420 = vshrl.u32 %v1419, 23
    %v1421 = vsub.s32 %v1420, 127
    %v1422 = vand.u32 2147483647, %v998
    %v1423 = vand.u32 %v1422, 8388607
    %v1424 = vor.u32 %v1423, 8388608
    %v1425 = vsub.s32 0, %v1424
    %v1426 = vadd.s32 %v1421, 1
    %vm1427 = vcmp.gt.s32.totalorder %v1426, 0
    %v1428 = vsel %vm1427, %v1426, 0
    %v1429 = vshrl.u32 %v1428, 5
    %v1430 = vand.u32 %v1428, 31
    %v1431 = vsub.s32 32, %v1430
    %v1432 = vshrl.u32 683565275, %v1431
    %v1433 = vshll.u32 683565275, %v1430
    %v1434 = vshrl.u32 2475754826, %v1431
    %v1435 = vor.u32 %v1433, %v1434
    %v1436 = vshll.u32 2475754826, %v1430
    %v1437 = vshrl.u32 2131351028, %v1431
    %v1438 = vor.u32 %v1436, %v1437
    %v1439 = vshll.u32 2131351028, %v1430
    %v1440 = vshrl.u32 2102212464, %v1431
    %v1441 = vor.u32 %v1439, %v1440
    %v1442 = vshll.u32 2102212464, %v1430
    %v1443 = vshrl.u32 920167782, %v1431
    %v1444 = vor.u32 %v1442, %v1443
    %v1445 = vshll.u32 920167782, %v1430
    %v1446 = vshrl.u32 1326507024, %v1431
    %v1447 = vor.u32 %v1445, %v1446
    %vm1448 = vcmp.lt.s32.totalorder %v1429, 1
    %vm1449 = vcmp.lt.s32.totalorder %v1429, 2
    %vm1450 = vcmp.lt.s32.totalorder %v1429, 3
    %vm1451 = vcmp.lt.s32.totalorder %v1429, 4
    %v1452 = vsel %vm1448, %v1432, %v1435
    %v1453 = vsel %vm1451, %v1441, 2102212464
    %v1454 = vsel %vm1450, %v1438, %v1453
    %v1455 = vsel %vm1449, %v1452, %v1454
    %v1456 = vsel %vm1448, %v1435, %v1438
    %v1457 = vsel %vm1451, %v1444, 920167782
    %v1458 = vsel %vm1450, %v1441, %v1457
    %v1459 = vsel %vm1449, %v1456, %v1458
    %v1460 = vsel %vm1448, %v1438, %v1441
    %v1461 = vsel %vm1451, %v1447, 1326507024
    %v1462 = vsel %vm1450, %v1444, %v1461
    %v1463 = vsel %vm1449, %v1460, %v1462
    %v1464 = vshll.u32 %v1424, 8
    %v1465 = vmul.u32.u64.compose %v1464, %v1463
    %v1466 = vextract.low.u32 %v1465
    %v1467 = vextract.high.u32 %v1465
    %v1468 = vmul.u32.u64.compose %v1464, %v1459
    %v1469 = vextract.low.u32 %v1468
    %v1470 = vextract.high.u32 %v1468
    %v1471 = vmul.u32 %v1464, %v1455
    %v1472 = vadd.s32 %v1467, %v1469
    %vm1473 = vc.u32 %v1467, %v1469
    %v1474 = vadd.s32 %v1470, 1
    %v1475 = vsel %vm1473, %v1474, %v1470
    %v1476 = vadd.s32 %v1471, %v1475
    %v1477 = vadd.s32 %v1476, 536870912
    %v1478 = vshrl.u32 %v1477, 30
    %v1479 = vshll.u32 %v1478, 30
    %v1480 = vsub.s32 %v1476, %v1479
    %vm1481 = vcmp.lt.s32.totalorder %v1480, 0
    %v1482 = vsub.s32 0, %v1480
    %v1483 = vsel %vm1481, %v1482, %v1480
    %v1484 = vclz %v1483
    %v1485 = vsub.s32 %v1484, 2
    %vm1486 = vcmp.gt.s32.totalorder 0, %v1485
    %v1487 = vsel %vm1486, 0, %v1485
    %v1488 = vsub.s32 32, %v1487
    %v1489 = vshll.u32 %v1480, %v1487
    %v1490 = vshrl.u32 %v1472, %v1488
    %v1491 = vor.u32 %v1489, %v1490
    %v1492 = vsub.s32 4294967266, %v1487
    %v1493 = vadd.s32 %v1492, 127
    %v1494 = vshll.u32 %v1493, 23
    %v1495 = vor.u32 4788187, %v1494
    %v1496 = vand.u32 2147483647, %v1495
    %v1498 = vcvt.s32.f32 %v1491
    %v1499 = vmul.f32 %v1498, %v1496
    %v1500 = vxor.u32 %v1499, 2147483648
    %v1501 = vsel %vm1418, %v1500, %v1499
    %v1502 = vsub.s32 4, %v1478
    %v1503 = vsel %vm1418, %v1502, %v1478
    %v1504 = vsel %vm1417, %v998, %v1501
    %v1505 = vsel %vm1417, 0, %v1503
    %v1506 = vcosq.f32.pop %v1504
    %v1507 = vsinq.f32.pop %v1504
    %vm1508 = vweird.f32 %v998
    %v1509 = vadd.s32 %v1505, 3
    %v1510 = vand.u32 %v1509, 3
    %vm1511 = vcmp.lt.s32.totalorder %v1510, 2
    %vm1512 = vcmp.eq.s32.totalorder %v1510, 0
    %v1513 = vxor.u32 %v1507, 2147483648
    %v1514 = vsel %vm1512, %v1506, %v1513
    %vm1515 = vcmp.eq.s32.totalorder %v1510, 2
    %v1516 = vxor.u32 %v1506, 2147483648
    %v1517 = vsel %vm1515, %v1516, %v1507
    %v1518 = vsel %vm1511, %v1514, %v1517
    %v1519 = vsel %vm1508, nan, %v1518
    %v1520 = vand.u32 2147483647, %v999
    %vm1521 = vcmp.le.f32.partialorder %v1520, 0.7853982
    %vm1522 = vcmp.lt.s32.totalorder %v999, 0
    %v1523 = vand.u32 %v999, 2139095040
    %v1524 = vshrl.u32 %v1523, 23
    %v1525 = vsub.s32 %v1524, 127
    %v1526 = vand.u32 2147483647, %v999
    %v1527 = vand.u32 %v1526, 8388607
    %v1528 = vor.u32 %v1527, 8388608
    %v1529 = vsub.s32 0, %v1528
    %v1530 = vadd.s32 %v1525, 1
    %vm1531 = vcmp.gt.s32.totalorder %v1530, 0
    %v1532 = vsel %vm1531, %v1530, 0
    %v1533 = vshrl.u32 %v1532, 5
    %v1534 = vand.u32 %v1532, 31
    %v1535 = vsub.s32 32, %v1534
    %v1536 = vshrl.u32 683565275, %v1535
    %v1537 = vshll.u32 683565275, %v1534
    %v1538 = vshrl.u32 2475754826, %v1535
    %v1539 = vor.u32 %v1537, %v1538
    %v1540 = vshll.u32 2475754826, %v1534
    %v1541 = vshrl.u32 2131351028, %v1535
    %v1542 = vor.u32 %v1540, %v1541
    %v1543 = vshll.u32 2131351028, %v1534
    %v1544 = vshrl.u32 2102212464, %v1535
    %v1545 = vor.u32 %v1543, %v1544
    %v1546 = vshll.u32 2102212464, %v1534
    %v1547 = vshrl.u32 920167782, %v1535
    %v1548 = vor.u32 %v1546, %v1547
    %v1549 = vshll.u32 920167782, %v1534
    %v1550 = vshrl.u32 1326507024, %v1535
    %v1551 = vor.u32 %v1549, %v1550
    %vm1552 = vcmp.lt.s32.totalorder %v1533, 1
    %vm1553 = vcmp.lt.s32.totalorder %v1533, 2
    %vm1554 = vcmp.lt.s32.totalorder %v1533, 3
    %vm1555 = vcmp.lt.s32.totalorder %v1533, 4
    %v1556 = vsel %vm1552, %v1536, %v1539
    %v1557 = vsel %vm1555, %v1545, 2102212464
    %v1558 = vsel %vm1554, %v1542, %v1557
    %v1559 = vsel %vm1553, %v1556, %v1558
    %v1560 = vsel %vm1552, %v1539, %v1542
    %v1561 = vsel %vm1555, %v1548, 920167782
    %v1562 = vsel %vm1554, %v1545, %v1561
    %v1563 = vsel %vm1553, %v1560, %v1562
    %v1564 = vsel %vm1552, %v1542, %v1545
    %v1565 = vsel %vm1555, %v1551, 1326507024
    %v1566 = vsel %vm1554, %v1548, %v1565
    %v1567 = vsel %vm1553, %v1564, %v1566
    %v1568 = vshll.u32 %v1528, 8
    %v1569 = vmul.u32.u64.compose %v1568, %v1567
    %v1570 = vextract.low.u32 %v1569
    %v1571 = vextract.high.u32 %v1569
    %v1572 = vmul.u32.u64.compose %v1568, %v1563
    %v1573 = vextract.low.u32 %v1572
    %v1574 = vextract.high.u32 %v1572
    %v1575 = vmul.u32 %v1568, %v1559
    %v1576 = vadd.s32 %v1571, %v1573
    %vm1577 = vc.u32 %v1571, %v1573
    %v1578 = vadd.s32 %v1574, 1
    %v1579 = vsel %vm1577, %v1578, %v1574
    %v1580 = vadd.s32 %v1575, %v1579
    %v1581 = vadd.s32 %v1580, 536870912
    %v1582 = vshrl.u32 %v1581, 30
    %v1583 = vshll.u32 %v1582, 30
    %v1584 = vsub.s32 %v1580, %v1583
    %vm1585 = vcmp.lt.s32.totalorder %v1584, 0
    %v1586 = vsub.s32 0, %v1584
    %v1587 = vsel %vm1585, %v1586, %v1584
    %v1588 = vclz %v1587
    %v1589 = vsub.s32 %v1588, 2
    %vm1590 = vcmp.gt.s32.totalorder 0, %v1589
    %v1591 = vsel %vm1590, 0, %v1589
    %v1592 = vsub.s32 32, %v1591
    %v1593 = vshll.u32 %v1584, %v1591
    %v1594 = vshrl.u32 %v1576, %v1592
    %v1595 = vor.u32 %v1593, %v1594
    %v1596 = vsub.s32 4294967266, %v1591
    %v1597 = vadd.s32 %v1596, 127
    %v1598 = vshll.u32 %v1597, 23
    %v1599 = vor.u32 4788187, %v1598
    %v1600 = vand.u32 2147483647, %v1599
    %v1602 = vcvt.s32.f32 %v1595
    %v1603 = vmul.f32 %v1602, %v1600
    %v1604 = vxor.u32 %v1603, 2147483648
    %v1605 = vsel %vm1522, %v1604, %v1603
    %v1606 = vsub.s32 4, %v1582
    %v1607 = vsel %vm1522, %v1606, %v1582
    %v1608 = vsel %vm1521, %v999, %v1605
    %v1609 = vsel %vm1521, 0, %v1607
    %v1610 = vcosq.f32.pop %v1608
    %v1611 = vsinq.f32.pop %v1608
    %vm1612 = vweird.f32 %v999
    %v1613 = vadd.s32 %v1609, 3
    %v1614 = vand.u32 %v1613, 3
    %vm1615 = vcmp.lt.s32.totalorder %v1614, 2
    %vm1616 = vcmp.eq.s32.totalorder %v1614, 0
    %v1617 = vxor.u32 %v1611, 2147483648
    %v1618 = vsel %vm1616, %v1610, %v1617
    %vm1619 = vcmp.eq.s32.totalorder %v1614, 2
    %v1620 = vxor.u32 %v1610, 2147483648
    %v1621 = vsel %vm1619, %v1620, %v1611
    %v1622 = vsel %vm1615, %v1618, %v1621
    %v1623 = vsel %vm1612, nan, %v1622
    %v1624 = vld [vmem:[%s8] sm:$0xff]
    %v1625 = vld [vmem:[%s8 + $0x8] sm:$0xff]
    %v1626 = vld [vmem:[%s8 + $0x10] sm:$0xff]
    %v1627 = vld [vmem:[%s8 + $0x18] sm:$0xff]
    %v1628 = vld [vmem:[%s8 + $0x20] sm:$0xff]
    %v1629 = vld [vmem:[%s8 + $0x28] sm:$0xff]
    %v1630 = vld [vmem:[%s8 + $0x30] sm:$0xff]
    %v1631 = vld [vmem:[%s8 + $0x38] sm:$0xff]
    %v1632 = vld [vmem:[%s8 + $0x40] sm:$0xff]
    %v1633 = vld [vmem:[%s8 + $0x48] sm:$0xff]
    %v1634 = vld [vmem:[%s8 + $0x50] sm:$0xff]
    %v1635 = vld [vmem:[%s8 + $0x58] sm:$0xff]
    %v1636 = vld [vmem:[%s8 + $0x60] sm:$0xff]
    %v1637 = vld [vmem:[%s8 + $0x68] sm:$0xff]
    %v1638 = vld [vmem:[%s8 + $0x70] sm:$0xff]
    %v1639 = vld [vmem:[%s8 + $0x78] sm:$0xff]
    %v1640 = vld [vmem:[%s8 + $0x80] sm:$0xff]
    %v1641 = vld [vmem:[%s8 + $0x88] sm:$0xff]
    %v1642 = vld [vmem:[%s8 + $0x90] sm:$0xff]
    %v1643 = vld [vmem:[%s8 + $0x98] sm:$0xff]
    %v1644 = vld [vmem:[%s8 + $0xa0] sm:$0xff]
    %v1645 = vld [vmem:[%s8 + $0xa8] sm:$0xff]
    %v1646 = vld [vmem:[%s8 + $0xb0] sm:$0xff]
    %v1647 = vld [vmem:[%s8 + $0xb8] sm:$0xff]
    %v1648 = vld [vmem:[%s8 + $0xc0] sm:$0xff]
    %v1649 = vld [vmem:[%s8 + $0xc8] sm:$0xff]
    %v1650 = vld [vmem:[%s8 + $0xd0] sm:$0xff]
    %v1651 = vld [vmem:[%s8 + $0xd8] sm:$0xff]
    %v1652 = vld [vmem:[%s8 + $0xe0] sm:$0xff]
    %v1653 = vld [vmem:[%s8 + $0xe8] sm:$0xff]
    %v1654 = vld [vmem:[%s8 + $0xf0] sm:$0xff]
    %v1655 = vld [vmem:[%s8 + $0xf8] sm:$0xff]
    %v1656 = vld [vmem:[%s8 + $0x100] sm:$0xff]
    %v1657 = vld [vmem:[%s8 + $0x108] sm:$0xff]
    %v1658 = vld [vmem:[%s8 + $0x110] sm:$0xff]
    %v1659 = vld [vmem:[%s8 + $0x118] sm:$0xff]
    %v1660 = vld [vmem:[%s8 + $0x120] sm:$0xff]
    %v1661 = vld [vmem:[%s8 + $0x128] sm:$0xf]
    %v1662 = vld [vmem:[%s9] sm:$0x1]
    %v1664 = vlaneseq
    %v1665 = vshrl.u32 %v1664, 7
    %v1666 = vsub.s32 0, %v1665
    %v1667 = vrot.slane %v1662, %v1666
    %v1670 = vsel %vm772, %v1311, 0
    %v1673 = vsel %vm772, %v1623, 0
    %v1676 = vsel %vm779, %v1661, 0
    %1678 = vmatprep.subr.mxu0 0.0
    %1679 = vmatpush1.msra.mxu0 %v1639
    %1680 = vmatprep.subr.mxu0 0.0
    %1681 = vmatpush1.msra.mxu0 %v1638
    %1682 = vmatprep.subr.mxu0 0.0
    %1683 = vmatpush1.msra.mxu0 %v1637
    %1684 = vmatprep.subr.mxu0 0.0
    %1685 = vmatpush1.msra.mxu0 %v1636
    %1686 = vmatprep.subr.mxu0 0.0
    %1687 = vmatpush1.msra.mxu0 %v1635
    %1688 = vmatprep.subr.mxu0 0.0
    %1689 = vmatpush1.msra.mxu0 %v1634
    %1690 = vmatprep.subr.mxu0 0.0
    %1691 = vmatpush1.msra.mxu0 %v1633
    %1692 = vmatprep.subr.mxu0 0.0
    %1693 = vmatpush1.msra.mxu0 %v1632
    %1694 = vmatprep.subr.mxu0 0.0
    %1695 = vmatpush1.msra.mxu0 %v1631
    %1696 = vmatprep.subr.mxu0 0.0
    %1697 = vmatpush1.msra.mxu0 %v1630
    %1698 = vmatprep.subr.mxu0 0.0
    %1699 = vmatpush1.msra.mxu0 %v1629
    %1700 = vmatprep.subr.mxu0 0.0
    %1701 = vmatpush1.msra.mxu0 %v1628
    %1702 = vmatprep.subr.mxu0 0.0
    %1703 = vmatpush1.msra.mxu0 %v1627
    %1704 = vmatprep.subr.mxu0 0.0
    %1705 = vmatpush1.msra.mxu0 %v1626
    %1706 = vmatprep.subr.mxu0 0.0
    %1707 = vmatpush1.msra.mxu0 %v1625
    %1708 = vmatprep.subr.mxu0 0.0
    %1709 = vmatpush1.msra.mxu0 %v1624
    %1710 = vmatprep.subr.mxu0 0.0
    %1711 = vmatpush2.msra.mxu0 %v1655
    %1712 = vmatprep.subr.mxu0 0.0
    %1713 = vmatpush2.msra.mxu0 %v1654
    %1714 = vmatprep.subr.mxu0 0.0
    %1715 = vmatpush2.msra.mxu0 %v1653
    %1716 = vmatprep.subr.mxu0 0.0
    %1717 = vmatpush2.msra.mxu0 %v1652
    %1718 = vmatprep.subr.mxu0 0.0
    %1719 = vmatpush2.msra.mxu0 %v1651
    %1720 = vmatprep.subr.mxu0 0.0
    %1721 = vmatpush2.msra.mxu0 %v1650
    %1722 = vmatprep.subr.mxu0 0.0
    %1723 = vmatpush2.msra.mxu0 %v1649
    %1724 = vmatprep.subr.mxu0 0.0
    %1725 = vmatpush2.msra.mxu0 %v1648
    %1726 = vmatprep.subr.mxu0 0.0
    %1727 = vmatpush2.msra.mxu0 %v1647
    %1728 = vmatprep.subr.mxu0 0.0
    %1729 = vmatpush2.msra.mxu0 %v1646
    %1730 = vmatprep.subr.mxu0 0.0
    %1731 = vmatpush2.msra.mxu0 %v1645
    %1732 = vmatprep.subr.mxu0 0.0
    %1733 = vmatpush2.msra.mxu0 %v1644
    %1734 = vmatprep.subr.mxu0 0.0
    %1735 = vmatpush2.msra.mxu0 %v1643
    %1736 = vmatprep.subr.mxu0 0.0
    %1737 = vmatpush2.msra.mxu0 %v1642
    %1738 = vmatprep.subr.mxu0 0.0
    %1739 = vmatpush2.msra.mxu0 %v1641
    %1740 = vmatprep.subr.mxu0 0.0
    %1741 = vmatpush2.msra.mxu0 %v1640
    %1742 = vmatprep.mubr.f32.mxu0 %v1207
    %1743 = vmatmul.mubr.f32.gmra.mxu0 %v1103
    %v1744 = vpop.f32.mrf.mxu0
    %v1745 = vadd.f32 %v1667, %v1744
    %v1746 = vpop.f32.mrf.mxu0
    %1747 = vmatprep.mubr.f32.mxu0 %v1519
    %1748 = vmatmul.mubr.f32.gmra.mxu0 %v1415
    %v1749 = vpop.f32.mrf.mxu0
    %v1750 = vadd.f32 %v1667, %v1749
    %v1751 = vpop.f32.mrf.mxu0
    %1752 = vdwg.mxu0
    %1753 = vmatprep.subr.mxu0 0.0
    %1754 = vmatpush1.msra.mxu0 0.0
    %1755 = vmatprep.subr.mxu0 0.0
    %1756 = vmatpush1.msra.mxu0 0.0
    %1757 = vmatprep.subr.mxu0 0.0
    %1758 = vmatpush1.msra.mxu0 0.0
    %1759 = vmatprep.subr.mxu0 0.0
    %1760 = vmatpush1.msra.mxu0 0.0
    %1761 = vmatprep.subr.mxu0 0.0
    %1762 = vmatpush1.msra.mxu0 0.0
    %1763 = vmatprep.subr.mxu0 0.0
    %1764 = vmatpush1.msra.mxu0 0.0
    %1765 = vmatprep.subr.mxu0 0.0
    %1766 = vmatpush1.msra.mxu0 0.0
    %1767 = vmatprep.subr.mxu0 0.0
    %1768 = vmatpush1.msra.mxu0 0.0
    %1769 = vmatprep.subr.mxu0 0.0
    %1770 = vmatpush1.msra.mxu0 0.0
    %1771 = vmatprep.subr.mxu0 0.0
    %1772 = vmatpush1.msra.mxu0 0.0
    %1773 = vmatprep.subr.mxu0 0.0
    %1774 = vmatpush1.msra.mxu0 %v1676
    %1775 = vmatprep.subr.mxu0 0.0
    %1776 = vmatpush1.msra.mxu0 %v1660
    %1777 = vmatprep.subr.mxu0 0.0
    %1778 = vmatpush1.msra.mxu0 %v1659
    %1779 = vmatprep.subr.mxu0 0.0
    %1780 = vmatpush1.msra.mxu0 %v1658
    %1781 = vmatprep.subr.mxu0 0.0
    %1782 = vmatpush1.msra.mxu0 %v1657
    %1783 = vmatprep.subr.mxu0 0.0
    %1784 = vmatpush1.msra.mxu0 %v1656
    %1785 = vmatprep.subr.mxu0 0.0
    %1786 = vmatpush2.msra.mxu0 0.0
    %1787 = vmatprep.subr.mxu0 0.0
    %1788 = vmatpush2.msra.mxu0 0.0
    %1789 = vmatprep.subr.mxu0 0.0
    %1790 = vmatpush2.msra.mxu0 0.0
    %1791 = vmatprep.subr.mxu0 0.0
    %1792 = vmatpush2.msra.mxu0 0.0
    %1793 = vmatprep.subr.mxu0 0.0
    %1794 = vmatpush2.msra.mxu0 0.0
    %1795 = vmatprep.subr.mxu0 0.0
    %1796 = vmatpush2.msra.mxu0 0.0
    %1797 = vmatprep.subr.mxu0 0.0
    %1798 = vmatpush2.msra.mxu0 0.0
    %1799 = vmatprep.subr.mxu0 0.0
    %1800 = vmatpush2.msra.mxu0 0.0
    %1801 = vmatprep.subr.mxu0 0.0
    %1802 = vmatpush2.msra.mxu0 0.0
    %1803 = vmatprep.subr.mxu0 0.0
    %1804 = vmatpush2.msra.mxu0 0.0
    %1805 = vmatprep.subr.mxu0 0.0
    %1806 = vmatpush2.msra.mxu0 0.0
    %1807 = vmatprep.subr.mxu0 0.0
    %1808 = vmatpush2.msra.mxu0 0.0
    %1809 = vmatprep.subr.mxu0 0.0
    %1810 = vmatpush2.msra.mxu0 0.0
    %1811 = vmatprep.subr.mxu0 0.0
    %1812 = vmatpush2.msra.mxu0 0.0
    %1813 = vmatprep.subr.mxu0 0.0
    %1814 = vmatpush2.msra.mxu0 0.0
    %1815 = vmatprep.subr.mxu0 0.0
    %1816 = vmatpush2.msra.mxu0 0.0
    %1817 = vmatprep.mubr.f32.mxu0 0.0
    %1818 = vmatmul.mubr.f32.gmra.mxu0 %v1670
    %v1819 = vpop.f32.mrf.mxu0
    %v1820 = vadd.f32 %v1745, %v1819
    %v1821 = vpop.f32.mrf.mxu0
    %1822 = vmatprep.mubr.f32.mxu0 0.0
    %1823 = vmatmul.mubr.f32.gmra.mxu0 %v1673
    %v1824 = vpop.f32.mrf.mxu0
    %v1825 = vadd.f32 %v1750, %v1824
    %v1826 = vpop.f32.mrf.mxu0
    %1827 = vdwg.mxu0
    %1828 = vst.msk [vmem:[#allocation4] sm:$0xff] %vm933, %v1820
    %1829 = vst.msk [vmem:[#allocation4 + $0x8] sm:$0xff] %vm933, %v1825
    // Predicated region
    $region42: #{tpu_custom_call.1} parent=1 // pred_check
      _
    $region43: #{tpu_custom_call.1} parent=1 // pred_check_branch
      %1831 = sbr.rel (0) target = $region45
    $region44: #{tpu_custom_call.1} parent=1 // pred_region
      %s1833 = ssub.s32 256, 256
      %1834 = vsyncadd [#allocation3], %s1833
      %s1835 = sshll.u32 [#allocation2], 4
      %s1836 = int_to_ptr.vmem [resolvable:$true] %s1835
      %1841 = dma.vmem_to_hbm [thread:$0]  %s1836, 256, %s10, [#allocation3], 128, 128, 8
    $region45: #{tpu_custom_call.1} parent=1 // pred_fallthru
      _
    // Predicated region
    $region46: #{tpu_custom_call.1} parent=1 // pred_check
      _
    $region47: #{tpu_custom_call.1} parent=1 // pred_check_branch
      %1843 = sbr.rel (0) target = $region49
    $region48: #{tpu_custom_call.1} parent=1 // pred_region
      %s1845 = ssub.s32 256, 256
      %1846 = vsyncadd [#allocation5], %s1845
      %s1847 = sshll.u32 [#allocation4], 4
      %s1848 = int_to_ptr.vmem [resolvable:$true] %s1847
      %1853 = dma.vmem_to_hbm [thread:$0]  %s1848, 256, %s11, [#allocation5], 128, 128, 8
    $region49: #{tpu_custom_call.1} parent=1 // pred_fallthru
      _
    // Predicated region
    $region50: #{tpu_custom_call.1} parent=1 // pred_check
      _
    $region51: #{tpu_custom_call.1} parent=1 // pred_check_branch
      %1855 = sbr.rel (0) target = $region53
    $region52: #{tpu_custom_call.1} parent=1 // pred_region
      %1856 = dma.done [#allocation3], 256
    $region53: #{tpu_custom_call.1} parent=1 // pred_fallthru
      _
    // Predicated region
    $region54: #{tpu_custom_call.1} parent=1 // pred_check
      _
    $region55: #{tpu_custom_call.1} parent=1 // pred_check_branch
      %1858 = sbr.rel (0) target = $region57
    $region56: #{tpu_custom_call.1} parent=1 // pred_region
      %1859 = dma.done [#allocation5], 256
    $region57: #{tpu_custom_call.1} parent=1 // pred_fallthru
      _
    %1860 = vsyncpa [#allocation3], 1
    %1861 = vsyncpa [#allocation5], 1

</llo_original>
